<compile_context>
chip_gen: v5e
topology: v5e:2x2
jax: 0.10.0
libtpu: 0.0.40
codegen_flags: <defaults>
</compile_context>

<pallas_src>
import functools

import jax
import jax.numpy as jnp
from jax.experimental import pallas as pl
from jax.experimental.pallas import tpu as pltpu


def decoder_rnn_kernel(tok_ref,                       # SMEM (T, B) int32   [scalar prefetch]
                       emb_ref,                       # VMEM (V, H)  f32    (resident)
                       h0_ref,                        # VMEM (B, H)  f32
                       w_rz_ref,                      # VMEM (2H, 2H) bf16  (resident)
                       w_in_ref, w_hn_ref,            # VMEM (H, H)   bf16  (resident)
                       b_rz_ref,                      # VMEM (1, 2H)  f32
                       b_in_ref, b_hn_ref,            # VMEM (1, H)   f32
                       w_out_ref,                     # VMEM (H, V)   bf16  (resident)
                       b_out_ref,                     # VMEM (1, V)   f32
                       logp_ref,                      # VMEM out (1, B, V) f32  per-step block
                       h_ref,                         # VMEM out (B, H) f32     carried state
                       *, batch, hidden_size):
    B, H = batch, hidden_size
    t = pl.program_id(0)

    # Initialize the carried hidden state from h0 on the first step.
    @pl.when(t == 0)
    def _init():
        h_ref[...] = h0_ref[...]

    h = h_ref[...]                                    # (B, H) f32, previous step's hidden

    # In-kernel embedding gather + ReLU: one dynamic-row slice per batch element.
    rows = [emb_ref[pl.ds(tok_ref[t, b], 1), :] for b in range(B)]
    x = jnp.maximum(jnp.concatenate(rows, axis=0), 0.0)          # (B, H) f32
    x_bf = x.astype(jnp.bfloat16)
    h_bf = h.astype(jnp.bfloat16)

    # r / z gates: single fused K=2H matmul on the MXU.
    xh = jnp.concatenate([x_bf, h_bf], axis=1)                   # (B, 2H) bf16
    rz = jnp.dot(xh, w_rz_ref[...],
                 preferred_element_type=jnp.float32) + b_rz_ref[...]
    r = jax.nn.sigmoid(rz[:, :H])
    z = jax.nn.sigmoid(rz[:, H:])

    # n gate: gi_n and gh_n kept separate (b_hh_n bias lives inside the r * gh_n term).
    gi_n = jnp.dot(x_bf, w_in_ref[...],
                   preferred_element_type=jnp.float32) + b_in_ref[...]
    gh_n = jnp.dot(h_bf, w_hn_ref[...],
                   preferred_element_type=jnp.float32) + b_hn_ref[...]
    n = jnp.tanh(gi_n + r * gh_n)

    h_new = (1.0 - z) * n + z * h                                # (B, H) f32

    # Output projection + numerically stable log_softmax over the vocab (lane) axis.
    logits = jnp.dot(h_new.astype(jnp.bfloat16), w_out_ref[...],
                     preferred_element_type=jnp.float32) + b_out_ref[...]
    m = jnp.max(logits, axis=-1, keepdims=True)
    shifted = logits - m
    lse = jnp.log(jnp.sum(jnp.exp(shifted), axis=-1, keepdims=True))

    logp_ref[0] = shifted - lse
    h_ref[...] = h_new


def decoder_rnn_decode(tokens, h0, params):
    """Run T teacher-forced DecoderRNN.forward steps in one fused kernel.

    tokens: (T, B) int32 token ids fed at each step.
    h0:     (B, H) f32 initial hidden state.
    Returns (log_probs (T, B, V) f32, final hidden (B, H) f32).
    """
    T, B = tokens.shape
    H = h0.shape[1]
    V = params["w_out_t"].shape[1]

    const2 = lambda t, tok: (0, 0)                   # resident operands: same block every step
    kernel = functools.partial(decoder_rnn_kernel, batch=B, hidden_size=H)

    grid_spec = pltpu.PrefetchScalarGridSpec(
        num_scalar_prefetch=1,                       # tokens -> SMEM, available to index_maps
        grid=(T,),
        in_specs=[
            pl.BlockSpec((V, H), const2),            # embedding table (gathered in-kernel)
            pl.BlockSpec((B, H), const2),            # h0
            pl.BlockSpec((2 * H, 2 * H), const2),    # fused r/z weight
            pl.BlockSpec((H, H), const2),            # w_ih_n
            pl.BlockSpec((H, H), const2),            # w_hh_n
            pl.BlockSpec((1, 2 * H), const2),        # pre-summed r/z bias
            pl.BlockSpec((1, H), const2),            # b_ih_n
            pl.BlockSpec((1, H), const2),            # b_hh_n
            pl.BlockSpec((H, V), const2),            # output projection weight
            pl.BlockSpec((1, V), const2),            # output bias
        ],
        out_specs=[
            pl.BlockSpec((1, B, V), lambda t, tok: (t, 0, 0)),   # per-step log-probs (lane-dense V)
            pl.BlockSpec((B, H), const2),                        # carried / final hidden state
        ],
    )

    log_probs, h_final = pl.pallas_call(
        kernel,
        grid_spec=grid_spec,
        out_shape=(
            jax.ShapeDtypeStruct((T, B, V), jnp.float32),
            jax.ShapeDtypeStruct((B, H), jnp.float32),
        ),
        compiler_params=pltpu.CompilerParams(
            dimension_semantics=("arbitrary",),      # recurrence over T is sequential
        ),
    )(
        tokens, params["embedding"], h0,
        params["w_rz"], params["w_in_n"], params["w_hn_n"],
        params["b_rz"], params["b_in_n"], params["b_hn_n"],
        params["w_out_t"], params["b_out"],
    )
    return log_probs, h_final


def decoder_rnn_forward(token_ids, hidden, params):
    """Single DecoderRNN.forward step (original module signature): (B,) ids, (B,H) hidden."""
    log_probs, h_new = decoder_rnn_decode(token_ids[None, :], hidden, params)
    return log_probs[0], h_new


def init_params(key, hidden_size, output_size):
    """Synthetic parameters in PyTorch layout, repacked for the fused kernel."""
    H, V = hidden_size, output_size
    ks = jax.random.split(key, 7)
    scale = 0.05
    emb = jax.random.normal(ks[0], (V, H), jnp.float32) * scale
    w_ih = jax.random.normal(ks[1], (3 * H, H), jnp.float32) * scale   # rows [r; z; n]
    w_hh = jax.random.normal(ks[2], (3 * H, H), jnp.float32) * scale
    b_ih = jax.random.normal(ks[3], (3 * H,), jnp.float32) * scale
    b_hh = jax.random.normal(ks[4], (3 * H,), jnp.float32) * scale
    w_out = jax.random.normal(ks[5], (V, H), jnp.float32) * scale
    b_out = jax.random.normal(ks[6], (V,), jnp.float32) * scale

    w_ih_t = w_ih.T                                   # (H, 3H), cols [r | z | n]
    w_hh_t = w_hh.T

    return {
        # f32 table: it is only gathered (never matmul'd) and DMA'd once since it is resident.
        "embedding": emb,
        # Fused r/z weight: [x ; h] @ w_rz == x @ W_ih_rz^T + h @ W_hh_rz^T.
        "w_rz": jnp.concatenate([w_ih_t[:, :2 * H], w_hh_t[:, :2 * H]],
                                axis=0).astype(jnp.bfloat16),         # (2H, 2H)
        "w_in_n": w_ih_t[:, 2 * H:].astype(jnp.bfloat16),             # (H, H)
        "w_hn_n": w_hh_t[:, 2 * H:].astype(jnp.bfloat16),             # (H, H)
        "b_rz": (b_ih[:2 * H] + b_hh[:2 * H]).reshape(1, -1),         # pre-summed r/z bias
        "b_in_n": b_ih[2 * H:].reshape(1, -1),                        # (1, H)
        "b_hn_n": b_hh[2 * H:].reshape(1, -1),                        # (1, H)
        "w_out_t": w_out.T.astype(jnp.bfloat16),                      # (H, V)
        "b_out": b_out.reshape(1, -1),                                # (1, V)
    }


def reference_decode(tokens, h0, params):
    """Pure-JAX reference mirroring PyTorch GRUCell semantics with the same bf16 weights."""
    T, _ = tokens.shape
    H = h0.shape[1]
    h = h0
    outs = []
    for t in range(T):
        x = jnp.maximum(jnp.take(params["embedding"], tokens[t], axis=0), 0.0)
        x_bf = x.astype(jnp.bfloat16)
        h_bf = h.astype(jnp.bfloat16)
        xh = jnp.concatenate([x_bf, h_bf], axis=1)
        rz = jnp.dot(xh, params["w_rz"], preferred_element_type=jnp.float32) + params["b_rz"]
        r = jax.nn.sigmoid(rz[:, :H])
        z = jax.nn.sigmoid(rz[:, H:])
        gi_n = jnp.dot(x_bf, params["w_in_n"],
                       preferred_element_type=jnp.float32) + params["b_in_n"]
        gh_n = jnp.dot(h_bf, params["w_hn_n"],
                       preferred_element_type=jnp.float32) + params["b_hn_n"]
        n = jnp.tanh(gi_n + r * gh_n)
        h = (1.0 - z) * n + z * h
        logits = jnp.dot(h.astype(jnp.bfloat16), params["w_out_t"],
                         preferred_element_type=jnp.float32) + params["b_out"]
        outs.append(jax.nn.log_softmax(logits, axis=-1))
    return jnp.stack(outs, axis=0), h


if __name__ == "__main__":
    T = 6            # fused decode steps
    B = 8            # batch
    HIDDEN = 256     # hidden_size (matches the module spec)
    VOCAB = 256      # output_size (kept a multiple of 128 for lane-dense stores)

    key = jax.random.PRNGKey(0)
    k_param, k_tok, k_hid = jax.random.split(key, 3)

    params = init_params(k_param, HIDDEN, VOCAB)
    tokens = jax.random.randint(k_tok, (T, B), 0, VOCAB, dtype=jnp.int32)
    h0 = jax.random.normal(k_hid, (B, HIDDEN), jnp.float32) * 0.1

    # Fused multi-step decode.
    log_probs, h_final = decoder_rnn_decode(tokens, h0, params)
    jax.block_until_ready((log_probs, h_final))

    ref_lp, ref_h = reference_decode(tokens, h0, params)
    assert log_probs.shape == (T, B, VOCAB) and h_final.shape == (B, HIDDEN)
    assert jnp.allclose(log_probs, ref_lp, atol=2e-2, rtol=2e-2), \
        float(jnp.max(jnp.abs(log_probs - ref_lp)))
    assert jnp.allclose(h_final, ref_h, atol=2e-2, rtol=2e-2), \
        float(jnp.max(jnp.abs(h_final - ref_h)))

    # Single-step path matching the original forward(input, hidden) signature.
    lp1, h1 = decoder_rnn_forward(tokens[0], h0, params)
    jax.block_until_ready((lp1, h1))
    assert jnp.allclose(lp1, ref_lp[0], atol=2e-2, rtol=2e-2)

    print("KERNEL_OK")
</pallas_src>

<mosaic_0001>
module attributes {stable_mosaic.version = 11 : i64} {
  func.func @decoder_rnn_kernel(%arg0: i32, %arg1: memref<6x8xi32, #tpu.memory_space<smem>>, %arg2: memref<256x256xf32, #tpu.memory_space<vmem>>, %arg3: memref<8x256xf32, #tpu.memory_space<vmem>>, %arg4: memref<512x512xbf16, #tpu.memory_space<vmem>>, %arg5: memref<256x256xbf16, #tpu.memory_space<vmem>>, %arg6: memref<256x256xbf16, #tpu.memory_space<vmem>>, %arg7: memref<1x512xf32, #tpu.memory_space<vmem>>, %arg8: memref<1x256xf32, #tpu.memory_space<vmem>>, %arg9: memref<1x256xf32, #tpu.memory_space<vmem>>, %arg10: memref<256x256xbf16, #tpu.memory_space<vmem>>, %arg11: memref<1x256xf32, #tpu.memory_space<vmem>>, %arg12: memref<1x8x256xf32, #tpu.memory_space<vmem>>, %arg13: memref<8x256xf32, #tpu.memory_space<vmem>>) attributes {dimension_semantics = [#tpu.dimension_semantics<arbitrary>], iteration_bounds = array<i64: 6>, scalar_prefetch = 1 : i64, scratch_operands = 0 : i64, tpu.core_type = #tpu.core_type<tc>, window_params = [{pipeline_mode = #tpu.pipeline_mode<synchronous>, transform_indices = @transform_0, window_bounds = array<i64: 256, 256>}, {pipeline_mode = #tpu.pipeline_mode<synchronous>, transform_indices = @transform_1, window_bounds = array<i64: 8, 256>}, {pipeline_mode = #tpu.pipeline_mode<synchronous>, transform_indices = @transform_2, window_bounds = array<i64: 512, 512>}, {pipeline_mode = #tpu.pipeline_mode<synchronous>, transform_indices = @transform_3, window_bounds = array<i64: 256, 256>}, {pipeline_mode = #tpu.pipeline_mode<synchronous>, transform_indices = @transform_4, window_bounds = array<i64: 256, 256>}, {pipeline_mode = #tpu.pipeline_mode<synchronous>, transform_indices = @transform_5, window_bounds = array<i64: 1, 512>}, {pipeline_mode = #tpu.pipeline_mode<synchronous>, transform_indices = @transform_6, window_bounds = array<i64: 1, 256>}, {pipeline_mode = #tpu.pipeline_mode<synchronous>, transform_indices = @transform_7, window_bounds = array<i64: 1, 256>}, {pipeline_mode = #tpu.pipeline_mode<synchronous>, transform_indices = @transform_8, window_bounds = array<i64: 256, 256>}, {pipeline_mode = #tpu.pipeline_mode<synchronous>, transform_indices = @transform_9, window_bounds = array<i64: 1, 256>}, {transform_indices = @transform_10, window_bounds = array<i64: 1, 8, 256>}, {pipeline_mode = #tpu.pipeline_mode<synchronous>, transform_indices = @transform_11, window_bounds = array<i64: 8, 256>}]} {
    %c0_i32 = arith.constant 0 : i32
    %0 = arith.cmpi eq, %arg0, %c0_i32 : i32
    %1 = arith.extui %0 : i1 to i32
    %c0_i32_0 = arith.constant 0 : i32
    %2 = arith.cmpi ne, %1, %c0_i32_0 : i32
    scf.if %2 {
      %c0_41 = arith.constant 0 : index
      %c0_42 = arith.constant 0 : index
      %97 = vector.load %arg3[%c0_41, %c0_42] : memref<8x256xf32, #tpu.memory_space<vmem>>, vector<8x256xf32>
      %c0_43 = arith.constant 0 : index
      %c0_44 = arith.constant 0 : index
      %98 = vector.load %arg13[%c0_43, %c0_44] : memref<8x256xf32, #tpu.memory_space<vmem>>, vector<8x256xf32>
      tpu.vector_store %arg13[%c0_43, %c0_44], %97 {strides = array<i32>} : memref<8x256xf32, #tpu.memory_space<vmem>>, vector<8x256xf32>,
    } else {
    }
    %c0 = arith.constant 0 : index
    %c0_1 = arith.constant 0 : index
    %3 = vector.load %arg13[%c0, %c0_1] : memref<8x256xf32, #tpu.memory_space<vmem>>, vector<8x256xf32>
    %4 = arith.index_cast %arg0 : i32 to index
    %c0_2 = arith.constant 0 : index
    %5 = memref.load %arg1[%4, %c0_2] : memref<6x8xi32, #tpu.memory_space<smem>>
    %6 = arith.index_cast %5 : i32 to index
    %c0_3 = arith.constant 0 : index
    %7 = vector.load %arg2[%6, %c0_3] : memref<256x256xf32, #tpu.memory_space<vmem>>, vector<1x256xf32>
    %8 = arith.index_cast %arg0 : i32 to index
    %c1 = arith.constant 1 : index
    %9 = memref.load %arg1[%8, %c1] : memref<6x8xi32, #tpu.memory_space<smem>>
    %10 = arith.index_cast %9 : i32 to index
    %c0_4 = arith.constant 0 : index
    %11 = vector.load %arg2[%10, %c0_4] : memref<256x256xf32, #tpu.memory_space<vmem>>, vector<1x256xf32>
    %12 = arith.index_cast %arg0 : i32 to index
    %c2 = arith.constant 2 : index
    %13 = memref.load %arg1[%12, %c2] : memref<6x8xi32, #tpu.memory_space<smem>>
    %14 = arith.index_cast %13 : i32 to index
    %c0_5 = arith.constant 0 : index
    %15 = vector.load %arg2[%14, %c0_5] : memref<256x256xf32, #tpu.memory_space<vmem>>, vector<1x256xf32>
    %16 = arith.index_cast %arg0 : i32 to index
    %c3 = arith.constant 3 : index
    %17 = memref.load %arg1[%16, %c3] : memref<6x8xi32, #tpu.memory_space<smem>>
    %18 = arith.index_cast %17 : i32 to index
    %c0_6 = arith.constant 0 : index
    %19 = vector.load %arg2[%18, %c0_6] : memref<256x256xf32, #tpu.memory_space<vmem>>, vector<1x256xf32>
    %20 = arith.index_cast %arg0 : i32 to index
    %c4 = arith.constant 4 : index
    %21 = memref.load %arg1[%20, %c4] : memref<6x8xi32, #tpu.memory_space<smem>>
    %22 = arith.index_cast %21 : i32 to index
    %c0_7 = arith.constant 0 : index
    %23 = vector.load %arg2[%22, %c0_7] : memref<256x256xf32, #tpu.memory_space<vmem>>, vector<1x256xf32>
    %24 = arith.index_cast %arg0 : i32 to index
    %c5 = arith.constant 5 : index
    %25 = memref.load %arg1[%24, %c5] : memref<6x8xi32, #tpu.memory_space<smem>>
    %26 = arith.index_cast %25 : i32 to index
    %c0_8 = arith.constant 0 : index
    %27 = vector.load %arg2[%26, %c0_8] : memref<256x256xf32, #tpu.memory_space<vmem>>, vector<1x256xf32>
    %28 = arith.index_cast %arg0 : i32 to index
    %c6 = arith.constant 6 : index
    %29 = memref.load %arg1[%28, %c6] : memref<6x8xi32, #tpu.memory_space<smem>>
    %30 = arith.index_cast %29 : i32 to index
    %c0_9 = arith.constant 0 : index
    %31 = vector.load %arg2[%30, %c0_9] : memref<256x256xf32, #tpu.memory_space<vmem>>, vector<1x256xf32>
    %32 = arith.index_cast %arg0 : i32 to index
    %c7 = arith.constant 7 : index
    %33 = memref.load %arg1[%32, %c7] : memref<6x8xi32, #tpu.memory_space<smem>>
    %34 = arith.index_cast %33 : i32 to index
    %c0_10 = arith.constant 0 : index
    %35 = vector.load %arg2[%34, %c0_10] : memref<256x256xf32, #tpu.memory_space<vmem>>, vector<1x256xf32>
    %36 = tpu.concatenate %7, %11, %15, %19, %23, %27, %31, %35 in 0 : vector<1x256xf32>, vector<1x256xf32>, vector<1x256xf32>, vector<1x256xf32>, vector<1x256xf32>, vector<1x256xf32>, vector<1x256xf32>, vector<1x256xf32> -> vector<8x256xf32>
    %cst = arith.constant 0.000000e+00 : f32
    %37 = vector.broadcast %cst : f32 to vector<8x256xf32>
    %38 = arith.maximumf %36, %37 : vector<8x256xf32>
    %39 = arith.truncf %38 : vector<8x256xf32> to vector<8x256xbf16>
    %40 = arith.truncf %3 : vector<8x256xf32> to vector<8x256xbf16>
    %41 = tpu.concatenate %39, %40 in 1 : vector<8x256xbf16>, vector<8x256xbf16> -> vector<8x512xbf16>
    %c0_11 = arith.constant 0 : index
    %c0_12 = arith.constant 0 : index
    %42 = vector.load %arg4[%c0_11, %c0_12] : memref<512x512xbf16, #tpu.memory_space<vmem>>, vector<512x512xbf16>
    %cst_13 = arith.constant dense<0.000000e+00> : vector<8x512xf32>
    %43 = tpu.matmul %41, %42, %cst_13 {dimension_numbers = #tpu.dot_dimension_numbers<[1], [0], [0], [1], [0, 0, 1, 1], [], []>} : vector<8x512xbf16>, vector<512x512xbf16>, vector<8x512xf32> -> vector<8x512xf32>
    %c0_14 = arith.constant 0 : index
    %c0_15 = arith.constant 0 : index
    %44 = vector.load %arg7[%c0_14, %c0_15] : memref<1x512xf32, #tpu.memory_space<vmem>>, vector<1x512xf32>
    %45 = vector.broadcast %44 : vector<1x512xf32> to vector<8x512xf32>
    %46 = arith.addf %43, %45 : vector<8x512xf32>
    %47 = vector.extract_strided_slice %46 {offsets = [0, 0], sizes = [8, 256], strides = [1, 1]} : vector<8x512xf32> to vector<8x256xf32>
    %48 = arith.negf %47 : vector<8x256xf32>
    %49 = math.exp %48 : vector<8x256xf32>
    %cst_16 = arith.constant 1.000000e+00 : f32
    %50 = vector.broadcast %cst_16 : f32 to vector<8x256xf32>
    %51 = arith.addf %50, %49 : vector<8x256xf32>
    %52 = arith.divf %50, %51 : vector<8x256xf32>
    %53 = vector.extract_strided_slice %46 {offsets = [0, 256], sizes = [8, 256], strides = [1, 1]} : vector<8x512xf32> to vector<8x256xf32>
    %54 = arith.negf %53 : vector<8x256xf32>
    %55 = math.exp %54 : vector<8x256xf32>
    %cst_17 = arith.constant 1.000000e+00 : f32
    %56 = vector.broadcast %cst_17 : f32 to vector<8x256xf32>
    %57 = arith.addf %56, %55 : vector<8x256xf32>
    %58 = arith.divf %56, %57 : vector<8x256xf32>
    %c0_18 = arith.constant 0 : index
    %c0_19 = arith.constant 0 : index
    %59 = vector.load %arg5[%c0_18, %c0_19] : memref<256x256xbf16, #tpu.memory_space<vmem>>, vector<256x256xbf16>
    %cst_20 = arith.constant dense<0.000000e+00> : vector<8x256xf32>
    %60 = tpu.matmul %39, %59, %cst_20 {dimension_numbers = #tpu.dot_dimension_numbers<[1], [0], [0], [1], [0, 0, 1, 1], [], []>} : vector<8x256xbf16>, vector<256x256xbf16>, vector<8x256xf32> -> vector<8x256xf32>
    %c0_21 = arith.constant 0 : index
    %c0_22 = arith.constant 0 : index
    %61 = vector.load %arg8[%c0_21, %c0_22] : memref<1x256xf32, #tpu.memory_space<vmem>>, vector<1x256xf32>
    %62 = vector.broadcast %61 : vector<1x256xf32> to vector<8x256xf32>
    %63 = arith.addf %60, %62 : vector<8x256xf32>
    %c0_23 = arith.constant 0 : index
    %c0_24 = arith.constant 0 : index
    %64 = vector.load %arg6[%c0_23, %c0_24] : memref<256x256xbf16, #tpu.memory_space<vmem>>, vector<256x256xbf16>
    %cst_25 = arith.constant dense<0.000000e+00> : vector<8x256xf32>
    %65 = tpu.matmul %40, %64, %cst_25 {dimension_numbers = #tpu.dot_dimension_numbers<[1], [0], [0], [1], [0, 0, 1, 1], [], []>} : vector<8x256xbf16>, vector<256x256xbf16>, vector<8x256xf32> -> vector<8x256xf32>
    %c0_26 = arith.constant 0 : index
    %c0_27 = arith.constant 0 : index
    %66 = vector.load %arg9[%c0_26, %c0_27] : memref<1x256xf32, #tpu.memory_space<vmem>>, vector<1x256xf32>
    %67 = vector.broadcast %66 : vector<1x256xf32> to vector<8x256xf32>
    %68 = arith.addf %65, %67 : vector<8x256xf32>
    %69 = arith.mulf %52, %68 : vector<8x256xf32>
    %70 = arith.addf %63, %69 : vector<8x256xf32>
    %71 = math.tanh %70 : vector<8x256xf32>
    %cst_28 = arith.constant 1.000000e+00 : f32
    %72 = vector.broadcast %cst_28 : f32 to vector<8x256xf32>
    %73 = arith.subf %72, %58 : vector<8x256xf32>
    %74 = arith.mulf %73, %71 : vector<8x256xf32>
    %75 = arith.mulf %58, %3 : vector<8x256xf32>
    %76 = arith.addf %74, %75 : vector<8x256xf32>
    %77 = arith.truncf %76 : vector<8x256xf32> to vector<8x256xbf16>
    %c0_29 = arith.constant 0 : index
    %c0_30 = arith.constant 0 : index
    %78 = vector.load %arg10[%c0_29, %c0_30] : memref<256x256xbf16, #tpu.memory_space<vmem>>, vector<256x256xbf16>
    %cst_31 = arith.constant dense<0.000000e+00> : vector<8x256xf32>
    %79 = tpu.matmul %77, %78, %cst_31 {dimension_numbers = #tpu.dot_dimension_numbers<[1], [0], [0], [1], [0, 0, 1, 1], [], []>} : vector<8x256xbf16>, vector<256x256xbf16>, vector<8x256xf32> -> vector<8x256xf32>
    %c0_32 = arith.constant 0 : index
    %c0_33 = arith.constant 0 : index
    %80 = vector.load %arg11[%c0_32, %c0_33] : memref<1x256xf32, #tpu.memory_space<vmem>>, vector<1x256xf32>
    %81 = vector.broadcast %80 : vector<1x256xf32> to vector<8x256xf32>
    %82 = arith.addf %79, %81 : vector<8x256xf32>
    %cst_34 = arith.constant dense<0xFF800000> : vector<8xf32>
    %83 = vector.multi_reduction <maximumf>, %82, %cst_34 [1] : vector<8x256xf32> to vector<8xf32>
    %84 = vector.shape_cast %83 : vector<8xf32> to vector<8x1xf32>
    %85 = vector.broadcast %84 : vector<8x1xf32> to vector<8x256xf32>
    %86 = arith.subf %82, %85 : vector<8x256xf32>
    %87 = math.exp %86 : vector<8x256xf32>
    %cst_35 = arith.constant dense<0.000000e+00> : vector<8xf32>
    %88 = vector.multi_reduction <add>, %87, %cst_35 [1] : vector<8x256xf32> to vector<8xf32>
    %89 = vector.shape_cast %88 : vector<8xf32> to vector<8x1xf32>
    %90 = math.log %89 : vector<8x1xf32>
    %91 = vector.broadcast %90 : vector<8x1xf32> to vector<8x256xf32>
    %92 = arith.subf %86, %91 : vector<8x256xf32>
    %c0_36 = arith.constant 0 : index
    %c0_37 = arith.constant 0 : index
    %c0_38 = arith.constant 0 : index
    %93 = vector.load %arg12[%c0_36, %c0_37, %c0_38] : memref<1x8x256xf32, #tpu.memory_space<vmem>>, vector<1x8x256xf32>
    %94 = vector.shape_cast %93 : vector<1x8x256xf32> to vector<8x256xf32>
    %95 = vector.shape_cast %92 : vector<8x256xf32> to vector<1x8x256xf32>
    tpu.vector_store %arg12[%c0_36, %c0_37, %c0_38], %95 {strides = array<i32>} : memref<1x8x256xf32, #tpu.memory_space<vmem>>, vector<1x8x256xf32>,
    %c0_39 = arith.constant 0 : index
    %c0_40 = arith.constant 0 : index
    %96 = vector.load %arg13[%c0_39, %c0_40] : memref<8x256xf32, #tpu.memory_space<vmem>>, vector<8x256xf32>
    tpu.vector_store %arg13[%c0_39, %c0_40], %76 {strides = array<i32>} : memref<8x256xf32, #tpu.memory_space<vmem>>, vector<8x256xf32>,
    return
  }
  func.func @transform_0(%arg0: i32, %arg1: memref<6x8xi32, #tpu.memory_space<smem>>) -> (i32, i32) {
    %c0_i32 = arith.constant 0 : i32
    %c0_i32_0 = arith.constant 0 : i32
    %c0_i32_1 = arith.constant 0 : i32
    return %c0_i32, %c0_i32_0 : i32, i32
  }
  func.func @transform_1(%arg0: i32, %arg1: memref<6x8xi32, #tpu.memory_space<smem>>) -> (i32, i32) {
    %c0_i32 = arith.constant 0 : i32
    %c0_i32_0 = arith.constant 0 : i32
    %c0_i32_1 = arith.constant 0 : i32
    return %c0_i32, %c0_i32_0 : i32, i32
  }
  func.func @transform_2(%arg0: i32, %arg1: memref<6x8xi32, #tpu.memory_space<smem>>) -> (i32, i32) {
    %c0_i32 = arith.constant 0 : i32
    %c0_i32_0 = arith.constant 0 : i32
    %c0_i32_1 = arith.constant 0 : i32
    return %c0_i32, %c0_i32_0 : i32, i32
  }
  func.func @transform_3(%arg0: i32, %arg1: memref<6x8xi32, #tpu.memory_space<smem>>) -> (i32, i32) {
    %c0_i32 = arith.constant 0 : i32
    %c0_i32_0 = arith.constant 0 : i32
    %c0_i32_1 = arith.constant 0 : i32
    return %c0_i32, %c0_i32_0 : i32, i32
  }
  func.func @transform_4(%arg0: i32, %arg1: memref<6x8xi32, #tpu.memory_space<smem>>) -> (i32, i32) {
    %c0_i32 = arith.constant 0 : i32
    %c0_i32_0 = arith.constant 0 : i32
    %c0_i32_1 = arith.constant 0 : i32
    return %c0_i32, %c0_i32_0 : i32, i32
  }
  func.func @transform_5(%arg0: i32, %arg1: memref<6x8xi32, #tpu.memory_space<smem>>) -> (i32, i32) {
    %c0_i32 = arith.constant 0 : i32
    %c0_i32_0 = arith.constant 0 : i32
    %c0_i32_1 = arith.constant 0 : i32
    return %c0_i32, %c0_i32_0 : i32, i32
  }
  func.func @transform_6(%arg0: i32, %arg1: memref<6x8xi32, #tpu.memory_space<smem>>) -> (i32, i32) {
    %c0_i32 = arith.constant 0 : i32
    %c0_i32_0 = arith.constant 0 : i32
    %c0_i32_1 = arith.constant 0 : i32
    return %c0_i32, %c0_i32_0 : i32, i32
  }
  func.func @transform_7(%arg0: i32, %arg1: memref<6x8xi32, #tpu.memory_space<smem>>) -> (i32, i32) {
    %c0_i32 = arith.constant 0 : i32
    %c0_i32_0 = arith.constant 0 : i32
    %c0_i32_1 = arith.constant 0 : i32
    return %c0_i32, %c0_i32_0 : i32, i32
  }
  func.func @transform_8(%arg0: i32, %arg1: memref<6x8xi32, #tpu.memory_space<smem>>) -> (i32, i32) {
    %c0_i32 = arith.constant 0 : i32
    %c0_i32_0 = arith.constant 0 : i32
    %c0_i32_1 = arith.constant 0 : i32
    return %c0_i32, %c0_i32_0 : i32, i32
  }
  func.func @transform_9(%arg0: i32, %arg1: memref<6x8xi32, #tpu.memory_space<smem>>) -> (i32, i32) {
    %c0_i32 = arith.constant 0 : i32
    %c0_i32_0 = arith.constant 0 : i32
    %c0_i32_1 = arith.constant 0 : i32
    return %c0_i32, %c0_i32_0 : i32, i32
  }
  func.func @transform_10(%arg0: i32, %arg1: memref<6x8xi32, #tpu.memory_space<smem>>) -> (i32, i32, i32) {
    %c0_i32 = arith.constant 0 : i32
    %c0_i32_0 = arith.constant 0 : i32
    %c0_i32_1 = arith.constant 0 : i32
    return %arg0, %c0_i32, %c0_i32_0 : i32, i32, i32
  }
  func.func @transform_11(%arg0: i32, %arg1: memref<6x8xi32, #tpu.memory_space<smem>>) -> (i32, i32) {
    %c0_i32 = arith.constant 0 : i32
    %c0_i32_0 = arith.constant 0 : i32
    %c0_i32_1 = arith.constant 0 : i32
    return %c0_i32, %c0_i32_0 : i32, i32
  }
}

</mosaic_0001>

<llo_original>
// kernel: tpu_custom_call.1
$region0: #{tpu_custom_call.1}
  #allocation0 [shape = 'u32[]', space=smem, size = 0x4, offset = 0x4, fixed_abs, tag = 'smem constant byte address 0x4 - core index']
  #allocation1 [shape = 'u32[72,128]{1,0:T(1,128)}', space=vmem, size = 0x9000, scoped, tag = 'internal scratch']
  #allocation2 [shape = 's32[1]{0}', space=sflag, size = 0x4, scoped, tag = 'scoped memory for tpu_custom_call.1']
  #allocation3 [shape = 'u8[4096]{0}', space=smem, size = 0x1000, scoped, tag = 'prefetched SMEM operand 0']
  %s0 = inlined_call_operand.hbm [shape: s32[6,8], index: 0, kind: input, shape index: {}]
  %s1 = inlined_call_operand.hbm [shape: f32[256,256], index: 1, kind: input, shape index: {}]
  %s2 = inlined_call_operand.hbm [shape: f32[8,256], index: 2, kind: input, shape index: {}]
  %s3 = inlined_call_operand.hbm [shape: bf16[512,512], index: 3, kind: input, shape index: {}]
  %s4 = inlined_call_operand.hbm [shape: bf16[256,256], index: 4, kind: input, shape index: {}]
  %s5 = inlined_call_operand.hbm [shape: bf16[256,256], index: 5, kind: input, shape index: {}]
  %s6 = inlined_call_operand.vmem [shape: f32[1,512], index: 6, kind: input, shape index: {}]
  %s7 = inlined_call_operand.vmem [shape: f32[1,256], index: 7, kind: input, shape index: {}]
  %s8 = inlined_call_operand.hbm [shape: f32[1,256], index: 8, kind: input, shape index: {}]
  %s9 = inlined_call_operand.hbm [shape: bf16[256,256], index: 9, kind: input, shape index: {}]
  %s10 = inlined_call_operand.vmem [shape: f32[1,256], index: 10, kind: input, shape index: {}]
  %s11 = inlined_call_operand.hbm [shape: f32[6,8,256], index: 11, kind: output, shape index: {0}]
  %s12 = inlined_call_operand.hbm [shape: f32[8,256], index: 12, kind: output, shape index: {1}]
  %13 = xla_tuple %s11, %s12
  %s14 = sld [smem:[#allocation0]]
  $region113: #{tpu_custom_call.1} parent=0
    _
  %s16 = ssub.s32 1, %s14
  %s17 = scalar_select 0, %s16, %s14
  %s19 = sshll.u32 %s0, 4
  %s20 = int_to_ptr.hbm [resolvable:$true] %s19
  %22 = dma.hbm_to_smem %s20, 128, [#allocation3], [#allocation2]
  %24 = dma.done [#allocation2], 128
  %25 = sfence
  $region1: #{tpu_custom_call.1} parent=0
    #allocation4 [shape = 'u8[262144]{0}', space=vmem, size = 0x40000, scoped, tag = 'input window, operand 1, single buffered']
    #allocation5 [shape = 's32[2]{0}', space=sflag, size = 0x8, scoped, tag = 'scoped memory for tpu_custom_call.1']
    #allocation6 [shape = 's32[2]{0}', space=sflag, size = 0x8, scoped, tag = 'scoped memory for tpu_custom_call.1']
    #allocation7 [shape = 'u8[8192]{0}', space=vmem, size = 0x2000, scoped, tag = 'input window, operand 2, single buffered']
    #allocation8 [shape = 's32[1]{0}', space=sflag, size = 0x4, scoped, tag = 'scoped memory for tpu_custom_call.1']
    #allocation9 [shape = 'u8[524288]{0}', space=vmem, size = 0x80000, scoped, tag = 'input window, operand 3, single buffered']
    #allocation10 [shape = 'u8[131072]{0}', space=vmem, size = 0x20000, scoped, tag = 'input window, operand 4, single buffered']
    #allocation11 [shape = 's32[1]{0}', space=sflag, size = 0x4, scoped, tag = 'scoped memory for tpu_custom_call.1']
    #allocation12 [shape = 'u8[131072]{0}', space=vmem, size = 0x20000, scoped, tag = 'input window, operand 5, single buffered']
    #allocation13 [shape = 'u8[1024]{0}', space=vmem, size = 0x400, scoped, tag = 'input window, operand 8, single buffered']
    #allocation14 [shape = 's32[1]{0}', space=sflag, size = 0x4, scoped, tag = 'scoped memory for tpu_custom_call.1']
    #allocation15 [shape = 'u8[131072]{0}', space=vmem, size = 0x20000, scoped, tag = 'input window, operand 9, single buffered']
    #allocation16 [shape = 'u8[16384]{0}', space=vmem, size = 0x4000, scoped, tag = 'output window, operand 0']
    #allocation17 [shape = 'u8[8192]{0}', space=vmem, size = 0x2000, scoped, tag = 'output window, operand 1, single buffered']
    #allocation18 [shape = 's32[1]{0}', space=sflag, size = 0x4, scoped, tag = 'scoped memory for tpu_custom_call.1']
    %26 = vsyncpa [#allocation5], 0
    %27 = vsyncpa [#allocation8], 0
    %28 = vsyncpa [#allocation11], 0
    %29 = vsyncpa [#allocation14], 0
    %30 = vsyncpa [#allocation6], 0
    %s31 = scalar_lea.sflag [#allocation6], 1
    %32 = vsyncpa %s31, 0
    %33 = vsyncpa [#allocation18], 0
    loop: start=0, step=1, limit=8
    $region2: #{tpu_custom_call.1} parent=1 // loop_pre_header
      _
    $region3: #{tpu_custom_call.1} parent=1 // loop_header
      %s35 = sphi 0, %s39
      %p36 = scmp.ge.s32.totalorder %s35, 8
      %s43 = sphi 0, %s43
      %s45 = sphi 0, %s43
      %s46 = sphi 0, %s45
      %s60 = sphi 0, %s46
      %s64 = sphi 0, %s64
      %s66 = sphi 0, %s64
      %s67 = sphi 0, %s66
      %s81 = sphi 0, %s67
      %s85 = sphi 0, %s85
      %s87 = sphi 0, %s85
      %s88 = sphi 0, %s87
      %s102 = sphi 0, %s88
      %s106 = sphi 0, %s106
      %s108 = sphi 0, %s106
      %s109 = sphi 0, %s108
      %s123 = sphi 0, %s109
      %s127 = sphi 0, %s127
      %s129 = sphi 0, %s127
      %s130 = sphi 0, %s129
      %s144 = sphi 0, %s130
      %s148 = sphi 0, %s148
      %s150 = sphi 0, %s148
      %s151 = sphi 0, %s150
      %s165 = sphi 0, %s151
      %s169 = sphi 0, %s169
      %s171 = sphi 0, %s169
      %s172 = sphi 0, %s171
      %s186 = sphi 0, %s172
      %s190 = sphi 0, %s190
      %s192 = sphi 0, %s190
      %s193 = sphi 0, %s192
      %s207 = sphi 0, %s193
      %s211 = sphi 0, %s211
      %s213 = sphi 0, %s211
      %s214 = sphi 0, %s213
      %s228 = sphi 0, %s214
      %s232 = sphi 0, %s232
      %s234 = sphi 0, %s232
      %s235 = sphi 0, %s234
      %s249 = sphi 0, %s235
      %s255 = sphi 0, %s257
      %s258 = sphi 0, %s255
      %s259 = sphi 0, %s258
      %s275 = sphi 0, %s259
      %s279 = sphi 0, %s279
      %s281 = sphi 0, %s279
      %s282 = sphi 0, %s281
      %s296 = sphi 0, %s282
    $region4: #{tpu_custom_call.1} parent=1 // loop_header_branch
      %38 = sbr.rel (%p36) target = $region8
    $region5: #{tpu_custom_call.1} parent=1 // loop_body
      %s40 = ssub.s32 %s35, 1
      %s41 = ssub.s32 %s35, 2
      %s42 = sadd.s32 %s35, 1
      %s44 = sadd.s32 %s43, 1
      %p47 = scmp.eq.s32.totalorder %s35, 5
      %p48 = scmp.ne.s32.totalorder %s43, %s45
      %p49 = scmp.eq.s32.totalorder %s35, 0
      %p50 = por %p48, %p49
      %p51 = scmp.ne.s32.totalorder %s43, %s45
      %p52 = scmp.eq.s32.totalorder %s40, 5
      %p53 = por %p51, %p52
      %p54 = scmp.ne.s32.totalorder %s45, %s46
      %p55 = scmp.eq.s32.totalorder %s40, 0
      %p56 = por %p54, %p55
      %p57 = scmp.ne.s32.totalorder %s45, %s46
      %p58 = scmp.eq.s32.totalorder %s41, 5
      %p59 = por %p57, %p58
      %p61 = scmp.ne.s32.totalorder %s46, %s60
      %p62 = scmp.eq.s32.totalorder %s41, 0
      %p63 = por %p61, %p62
      %s65 = sadd.s32 %s64, 1
      %p68 = scmp.eq.s32.totalorder %s35, 5
      %p69 = scmp.ne.s32.totalorder %s64, %s66
      %p70 = scmp.eq.s32.totalorder %s35, 0
      %p71 = por %p69, %p70
      %p72 = scmp.ne.s32.totalorder %s64, %s66
      %p73 = scmp.eq.s32.totalorder %s40, 5
      %p74 = por %p72, %p73
      %p75 = scmp.ne.s32.totalorder %s66, %s67
      %p76 = scmp.eq.s32.totalorder %s40, 0
      %p77 = por %p75, %p76
      %p78 = scmp.ne.s32.totalorder %s66, %s67
      %p79 = scmp.eq.s32.totalorder %s41, 5
      %p80 = por %p78, %p79
      %p82 = scmp.ne.s32.totalorder %s67, %s81
      %p83 = scmp.eq.s32.totalorder %s41, 0
      %p84 = por %p82, %p83
      %s86 = sadd.s32 %s85, 1
      %p89 = scmp.eq.s32.totalorder %s35, 5
      %p90 = scmp.ne.s32.totalorder %s85, %s87
      %p91 = scmp.eq.s32.totalorder %s35, 0
      %p92 = por %p90, %p91
      %p93 = scmp.ne.s32.totalorder %s85, %s87
      %p94 = scmp.eq.s32.totalorder %s40, 5
      %p95 = por %p93, %p94
      %p96 = scmp.ne.s32.totalorder %s87, %s88
      %p97 = scmp.eq.s32.totalorder %s40, 0
      %p98 = por %p96, %p97
      %p99 = scmp.ne.s32.totalorder %s87, %s88
      %p100 = scmp.eq.s32.totalorder %s41, 5
      %p101 = por %p99, %p100
      %p103 = scmp.ne.s32.totalorder %s88, %s102
      %p104 = scmp.eq.s32.totalorder %s41, 0
      %p105 = por %p103, %p104
      %s107 = sadd.s32 %s106, 1
      %p110 = scmp.eq.s32.totalorder %s35, 5
      %p111 = scmp.ne.s32.totalorder %s106, %s108
      %p112 = scmp.eq.s32.totalorder %s35, 0
      %p113 = por %p111, %p112
      %p114 = scmp.ne.s32.totalorder %s106, %s108
      %p115 = scmp.eq.s32.totalorder %s40, 5
      %p116 = por %p114, %p115
      %p117 = scmp.ne.s32.totalorder %s108, %s109
      %p118 = scmp.eq.s32.totalorder %s40, 0
      %p119 = por %p117, %p118
      %p120 = scmp.ne.s32.totalorder %s108, %s109
      %p121 = scmp.eq.s32.totalorder %s41, 5
      %p122 = por %p120, %p121
      %p124 = scmp.ne.s32.totalorder %s109, %s123
      %p125 = scmp.eq.s32.totalorder %s41, 0
      %p126 = por %p124, %p125
      %s128 = sadd.s32 %s127, 1
      %p131 = scmp.eq.s32.totalorder %s35, 5
      %p132 = scmp.ne.s32.totalorder %s127, %s129
      %p133 = scmp.eq.s32.totalorder %s35, 0
      %p134 = por %p132, %p133
      %p135 = scmp.ne.s32.totalorder %s127, %s129
      %p136 = scmp.eq.s32.totalorder %s40, 5
      %p137 = por %p135, %p136
      %p138 = scmp.ne.s32.totalorder %s129, %s130
      %p139 = scmp.eq.s32.totalorder %s40, 0
      %p140 = por %p138, %p139
      %p141 = scmp.ne.s32.totalorder %s129, %s130
      %p142 = scmp.eq.s32.totalorder %s41, 5
      %p143 = por %p141, %p142
      %p145 = scmp.ne.s32.totalorder %s130, %s144
      %p146 = scmp.eq.s32.totalorder %s41, 0
      %p147 = por %p145, %p146
      %s149 = sadd.s32 %s148, 1
      %p152 = scmp.eq.s32.totalorder %s35, 5
      %p153 = scmp.ne.s32.totalorder %s148, %s150
      %p154 = scmp.eq.s32.totalorder %s35, 0
      %p155 = por %p153, %p154
      %p156 = scmp.ne.s32.totalorder %s148, %s150
      %p157 = scmp.eq.s32.totalorder %s40, 5
      %p158 = por %p156, %p157
      %p159 = scmp.ne.s32.totalorder %s150, %s151
      %p160 = scmp.eq.s32.totalorder %s40, 0
      %p161 = por %p159, %p160
      %p162 = scmp.ne.s32.totalorder %s150, %s151
      %p163 = scmp.eq.s32.totalorder %s41, 5
      %p164 = por %p162, %p163
      %p166 = scmp.ne.s32.totalorder %s151, %s165
      %p167 = scmp.eq.s32.totalorder %s41, 0
      %p168 = por %p166, %p167
      %s170 = sadd.s32 %s169, 1
      %p173 = scmp.eq.s32.totalorder %s35, 5
      %p174 = scmp.ne.s32.totalorder %s169, %s171
      %p175 = scmp.eq.s32.totalorder %s35, 0
      %p176 = por %p174, %p175
      %p177 = scmp.ne.s32.totalorder %s169, %s171
      %p178 = scmp.eq.s32.totalorder %s40, 5
      %p179 = por %p177, %p178
      %p180 = scmp.ne.s32.totalorder %s171, %s172
      %p181 = scmp.eq.s32.totalorder %s40, 0
      %p182 = por %p180, %p181
      %p183 = scmp.ne.s32.totalorder %s171, %s172
      %p184 = scmp.eq.s32.totalorder %s41, 5
      %p185 = por %p183, %p184
      %p187 = scmp.ne.s32.totalorder %s172, %s186
      %p188 = scmp.eq.s32.totalorder %s41, 0
      %p189 = por %p187, %p188
      %s191 = sadd.s32 %s190, 1
      %p194 = scmp.eq.s32.totalorder %s35, 5
      %p195 = scmp.ne.s32.totalorder %s190, %s192
      %p196 = scmp.eq.s32.totalorder %s35, 0
      %p197 = por %p195, %p196
      %p198 = scmp.ne.s32.totalorder %s190, %s192
      %p199 = scmp.eq.s32.totalorder %s40, 5
      %p200 = por %p198, %p199
      %p201 = scmp.ne.s32.totalorder %s192, %s193
      %p202 = scmp.eq.s32.totalorder %s40, 0
      %p203 = por %p201, %p202
      %p204 = scmp.ne.s32.totalorder %s192, %s193
      %p205 = scmp.eq.s32.totalorder %s41, 5
      %p206 = por %p204, %p205
      %p208 = scmp.ne.s32.totalorder %s193, %s207
      %p209 = scmp.eq.s32.totalorder %s41, 0
      %p210 = por %p208, %p209
      %s212 = sadd.s32 %s211, 1
      %p215 = scmp.eq.s32.totalorder %s35, 5
      %p216 = scmp.ne.s32.totalorder %s211, %s213
      %p217 = scmp.eq.s32.totalorder %s35, 0
      %p218 = por %p216, %p217
      %p219 = scmp.ne.s32.totalorder %s211, %s213
      %p220 = scmp.eq.s32.totalorder %s40, 5
      %p221 = por %p219, %p220
      %p222 = scmp.ne.s32.totalorder %s213, %s214
      %p223 = scmp.eq.s32.totalorder %s40, 0
      %p224 = por %p222, %p223
      %p225 = scmp.ne.s32.totalorder %s213, %s214
      %p226 = scmp.eq.s32.totalorder %s41, 5
      %p227 = por %p225, %p226
      %p229 = scmp.ne.s32.totalorder %s214, %s228
      %p230 = scmp.eq.s32.totalorder %s41, 0
      %p231 = por %p229, %p230
      %s233 = sadd.s32 %s232, 1
      %p236 = scmp.eq.s32.totalorder %s35, 5
      %p237 = scmp.ne.s32.totalorder %s232, %s234
      %p238 = scmp.eq.s32.totalorder %s35, 0
      %p239 = por %p237, %p238
      %p240 = scmp.ne.s32.totalorder %s232, %s234
      %p241 = scmp.eq.s32.totalorder %s40, 5
      %p242 = por %p240, %p241
      %p243 = scmp.ne.s32.totalorder %s234, %s235
      %p244 = scmp.eq.s32.totalorder %s40, 0
      %p245 = por %p243, %p244
      %p246 = scmp.ne.s32.totalorder %s234, %s235
      %p247 = scmp.eq.s32.totalorder %s41, 5
      %p248 = por %p246, %p247
      %p250 = scmp.ne.s32.totalorder %s235, %s249
      %p251 = scmp.eq.s32.totalorder %s41, 0
      %p252 = por %p250, %p251
      %s253 = ssub.s32 %s35, %s42
      %p254 = scmp.eq.s32.totalorder %s253, 0
      %s256 = sadd.s32 %s255, 1
      %s257 = scalar_select %p254, %s255, %s256
      %p260 = pneg %p254
      %p261 = scmp.eq.s32.totalorder %s35, 5
      %p262 = por %p260, %p261
      %p263 = scmp.ne.s32.totalorder %s255, %s258
      %p264 = scmp.eq.s32.totalorder %s35, 0
      %p265 = por %p263, %p264
      %p266 = scmp.ne.s32.totalorder %s255, %s258
      %p267 = scmp.eq.s32.totalorder %s40, 5
      %p268 = por %p266, %p267
      %p269 = scmp.ne.s32.totalorder %s258, %s259
      %p270 = scmp.eq.s32.totalorder %s40, 0
      %p271 = por %p269, %p270
      %p272 = scmp.ne.s32.totalorder %s258, %s259
      %p273 = scmp.eq.s32.totalorder %s41, 5
      %p274 = por %p272, %p273
      %p276 = scmp.ne.s32.totalorder %s259, %s275
      %p277 = scmp.eq.s32.totalorder %s41, 0
      %p278 = por %p276, %p277
      %s280 = sadd.s32 %s279, 1
      %p283 = scmp.eq.s32.totalorder %s35, 5
      %p284 = scmp.ne.s32.totalorder %s279, %s281
      %p285 = scmp.eq.s32.totalorder %s35, 0
      %p286 = por %p284, %p285
      %p287 = scmp.ne.s32.totalorder %s279, %s281
      %p288 = scmp.eq.s32.totalorder %s40, 5
      %p289 = por %p287, %p288
      %p290 = scmp.ne.s32.totalorder %s281, %s282
      %p291 = scmp.eq.s32.totalorder %s40, 0
      %p292 = por %p290, %p291
      %p293 = scmp.ne.s32.totalorder %s281, %s282
      %p294 = scmp.eq.s32.totalorder %s41, 5
      %p295 = por %p293, %p294
      %p297 = scmp.ne.s32.totalorder %s282, %s296
      %p298 = scmp.eq.s32.totalorder %s41, 0
      %p299 = por %p297, %p298
      %p300 = scmp.le.s32.totalorder 1, %s35
      %p301 = scmp.lt.s32.totalorder %s35, 7
      %p302 = pnand %p300, %p301
      %p303 = pneg %p302
      // Predicated region
      $region9: #{tpu_custom_call.1} parent=5 // pred_check
        _
      $region10: #{tpu_custom_call.1} parent=5 // pred_check_branch
        %305 = sbr.rel (%p302) target = $region12
      $region11: #{tpu_custom_call.1} parent=5 // pred_region
        %s306 = ssub.s32 %s35, 1
        // Predicated region
        $region13: #{tpu_custom_call.1} parent=11 // pred_check
          %p307 = pneg %p56
        $region14: #{tpu_custom_call.1} parent=11 // pred_check_branch
          %309 = sbr.rel (%p307) target = $region16
        $region15: #{tpu_custom_call.1} parent=11 // pred_region
          %311 = vsyncadd [#allocation5], 0
          %s312 = sshll.u32 %s1, 4
          %s313 = int_to_ptr.hbm [resolvable:$true] %s312
          %s314 = sshll.u32 [#allocation4], 4
          %s315 = int_to_ptr.vmem [resolvable:$true] %s314
          %320 = dma.hbm_to_vmem [thread:$0]  %s313, 8192, %s315, [#allocation5], 256, 256, 16
        $region16: #{tpu_custom_call.1} parent=11 // pred_fallthru
          _
        // Predicated region
        $region17: #{tpu_custom_call.1} parent=11 // pred_check
          %p321 = pneg %p77
        $region18: #{tpu_custom_call.1} parent=11 // pred_check_branch
          %323 = sbr.rel (%p321) target = $region20
        $region19: #{tpu_custom_call.1} parent=11 // pred_region
          %325 = vsyncadd [#allocation8], 0
          %s327 = sshll.u32 %s2, 4
          %s328 = int_to_ptr.hbm [resolvable:$true] %s327
          %s329 = sshll.u32 [#allocation7], 4
          %s330 = int_to_ptr.vmem [resolvable:$true] %s329
          %332 = dma.hbm_to_vmem [thread:$0]  %s328, 256, %s330, [#allocation8]
        $region20: #{tpu_custom_call.1} parent=11 // pred_fallthru
          _
        // Predicated region
        $region21: #{tpu_custom_call.1} parent=11 // pred_check
          %p333 = pneg %p98
        $region22: #{tpu_custom_call.1} parent=11 // pred_check_branch
          %335 = sbr.rel (%p333) target = $region24
        $region23: #{tpu_custom_call.1} parent=11 // pred_region
          %337 = vsyncadd [#allocation8], 0
          %s338 = sshll.u32 %s3, 4
          %s339 = int_to_ptr.hbm [resolvable:$true] %s338
          %s340 = sshll.u32 [#allocation9], 4
          %s341 = int_to_ptr.vmem [resolvable:$true] %s340
          %346 = dma.hbm_to_vmem [thread:$0]  %s339, 16384, %s341, [#allocation8], 256, 256, 16
        $region24: #{tpu_custom_call.1} parent=11 // pred_fallthru
          _
        // Predicated region
        $region25: #{tpu_custom_call.1} parent=11 // pred_check
          %p347 = pneg %p119
        $region26: #{tpu_custom_call.1} parent=11 // pred_check_branch
          %349 = sbr.rel (%p347) target = $region28
        $region27: #{tpu_custom_call.1} parent=11 // pred_region
          %351 = vsyncadd [#allocation11], 0
          %s352 = sshll.u32 %s4, 4
          %s353 = int_to_ptr.hbm [resolvable:$true] %s352
          %s354 = sshll.u32 [#allocation10], 4
          %s355 = int_to_ptr.vmem [resolvable:$true] %s354
          %360 = dma.hbm_to_vmem [thread:$0]  %s353, 4096, %s355, [#allocation11], 128, 128, 8
        $region28: #{tpu_custom_call.1} parent=11 // pred_fallthru
          _
        // Predicated region
        $region29: #{tpu_custom_call.1} parent=11 // pred_check
          %p361 = pneg %p140
        $region30: #{tpu_custom_call.1} parent=11 // pred_check_branch
          %363 = sbr.rel (%p361) target = $region32
        $region31: #{tpu_custom_call.1} parent=11 // pred_region
          %365 = vsyncadd [#allocation11], 0
          %s366 = sshll.u32 %s5, 4
          %s367 = int_to_ptr.hbm [resolvable:$true] %s366
          %s368 = sshll.u32 [#allocation12], 4
          %s369 = int_to_ptr.vmem [resolvable:$true] %s368
          %374 = dma.hbm_to_vmem [thread:$0]  %s367, 4096, %s369, [#allocation11], 128, 128, 8
        $region32: #{tpu_custom_call.1} parent=11 // pred_fallthru
          _
        // Predicated region
        $region33: #{tpu_custom_call.1} parent=11 // pred_check
          %p375 = pneg %p161
        $region34: #{tpu_custom_call.1} parent=11 // pred_check_branch
          %377 = sbr.rel (%p375) target = $region36
        $region35: #{tpu_custom_call.1} parent=11 // pred_region
          _
        $region36: #{tpu_custom_call.1} parent=11 // pred_fallthru
          _
        // Predicated region
        $region37: #{tpu_custom_call.1} parent=11 // pred_check
          %p378 = pneg %p182
        $region38: #{tpu_custom_call.1} parent=11 // pred_check_branch
          %380 = sbr.rel (%p378) target = $region40
        $region39: #{tpu_custom_call.1} parent=11 // pred_region
          _
        $region40: #{tpu_custom_call.1} parent=11 // pred_fallthru
          _
        // Predicated region
        $region41: #{tpu_custom_call.1} parent=11 // pred_check
          %p381 = pneg %p203
        $region42: #{tpu_custom_call.1} parent=11 // pred_check_branch
          %383 = sbr.rel (%p381) target = $region44
        $region43: #{tpu_custom_call.1} parent=11 // pred_region
          %385 = vsyncadd [#allocation14], 0
          %s387 = sshll.u32 %s8, 4
          %s388 = int_to_ptr.hbm [resolvable:$true] %s387
          %s389 = sshll.u32 [#allocation13], 4
          %s390 = int_to_ptr.vmem [resolvable:$true] %s389
          %392 = dma.hbm_to_vmem [thread:$0]  %s388, 32, %s390, [#allocation14]
        $region44: #{tpu_custom_call.1} parent=11 // pred_fallthru
          _
        // Predicated region
        $region45: #{tpu_custom_call.1} parent=11 // pred_check
          %p393 = pneg %p224
        $region46: #{tpu_custom_call.1} parent=11 // pred_check_branch
          %395 = sbr.rel (%p393) target = $region48
        $region47: #{tpu_custom_call.1} parent=11 // pred_region
          %397 = vsyncadd [#allocation14], 0
          %s398 = sshll.u32 %s9, 4
          %s399 = int_to_ptr.hbm [resolvable:$true] %s398
          %s400 = sshll.u32 [#allocation15], 4
          %s401 = int_to_ptr.vmem [resolvable:$true] %s400
          %406 = dma.hbm_to_vmem [thread:$0]  %s399, 4096, %s401, [#allocation14], 128, 128, 8
        $region48: #{tpu_custom_call.1} parent=11 // pred_fallthru
          _
        // Predicated region
        $region49: #{tpu_custom_call.1} parent=11 // pred_check
          %p407 = pneg %p245
        $region50: #{tpu_custom_call.1} parent=11 // pred_check_branch
          %409 = sbr.rel (%p407) target = $region52
        $region51: #{tpu_custom_call.1} parent=11 // pred_region
          _
        $region52: #{tpu_custom_call.1} parent=11 // pred_fallthru
          _
      $region12: #{tpu_custom_call.1} parent=5 // pred_fallthru
        _
      %p410 = scmp.lt.s32.totalorder %s35, 6
      // Predicated region
      $region53: #{tpu_custom_call.1} parent=5 // pred_check
        %p411 = pneg %p410
      $region54: #{tpu_custom_call.1} parent=5 // pred_check_branch
        %413 = sbr.rel (%p411) target = $region56
      $region55: #{tpu_custom_call.1} parent=5 // pred_region
        _
      $region56: #{tpu_custom_call.1} parent=5 // pred_fallthru
        _
      %p414 = scmp.le.s32.totalorder 1, %s35
      %p415 = scmp.lt.s32.totalorder %s35, 7
      %p416 = pnand %p414, %p415
      %p417 = pneg %p416
      // Predicated region
      $region57: #{tpu_custom_call.1} parent=5 // pred_check
        _
      $region58: #{tpu_custom_call.1} parent=5 // pred_check_branch
        %419 = sbr.rel (%p416) target = $region60
      $region59: #{tpu_custom_call.1} parent=5 // pred_region
        %s420 = ssub.s32 %s35, 1
        // Predicated region
        $region61: #{tpu_custom_call.1} parent=59 // pred_check
          %p421 = pneg %p56
        $region62: #{tpu_custom_call.1} parent=59 // pred_check_branch
          %423 = sbr.rel (%p421) target = $region64
        $region63: #{tpu_custom_call.1} parent=59 // pred_region
          %425 = dma.done [#allocation5], 8192
        $region64: #{tpu_custom_call.1} parent=59 // pred_fallthru
          _
        // Predicated region
        $region65: #{tpu_custom_call.1} parent=59 // pred_check
          %p426 = pneg %p77
        $region66: #{tpu_custom_call.1} parent=59 // pred_check_branch
          %428 = sbr.rel (%p426) target = $region68
        $region67: #{tpu_custom_call.1} parent=59 // pred_region
          %430 = dma.done [#allocation8], 256
        $region68: #{tpu_custom_call.1} parent=59 // pred_fallthru
          _
        // Predicated region
        $region69: #{tpu_custom_call.1} parent=59 // pred_check
          %p431 = pneg %p98
        $region70: #{tpu_custom_call.1} parent=59 // pred_check_branch
          %433 = sbr.rel (%p431) target = $region72
        $region71: #{tpu_custom_call.1} parent=59 // pred_region
          %435 = dma.done [#allocation8], 16384
        $region72: #{tpu_custom_call.1} parent=59 // pred_fallthru
          _
        // Predicated region
        $region73: #{tpu_custom_call.1} parent=59 // pred_check
          %p436 = pneg %p119
        $region74: #{tpu_custom_call.1} parent=59 // pred_check_branch
          %438 = sbr.rel (%p436) target = $region76
        $region75: #{tpu_custom_call.1} parent=59 // pred_region
          %440 = dma.done [#allocation11], 4096
        $region76: #{tpu_custom_call.1} parent=59 // pred_fallthru
          _
        // Predicated region
        $region77: #{tpu_custom_call.1} parent=59 // pred_check
          %p441 = pneg %p140
        $region78: #{tpu_custom_call.1} parent=59 // pred_check_branch
          %443 = sbr.rel (%p441) target = $region80
        $region79: #{tpu_custom_call.1} parent=59 // pred_region
          %445 = dma.done [#allocation11], 4096
        $region80: #{tpu_custom_call.1} parent=59 // pred_fallthru
          _
        // Predicated region
        $region81: #{tpu_custom_call.1} parent=59 // pred_check
          %p446 = pneg %p203
        $region82: #{tpu_custom_call.1} parent=59 // pred_check_branch
          %448 = sbr.rel (%p446) target = $region84
        $region83: #{tpu_custom_call.1} parent=59 // pred_region
          %450 = dma.done [#allocation14], 32
        $region84: #{tpu_custom_call.1} parent=59 // pred_fallthru
          _
        // Predicated region
        $region85: #{tpu_custom_call.1} parent=59 // pred_check
          %p451 = pneg %p224
        $region86: #{tpu_custom_call.1} parent=59 // pred_check_branch
          %453 = sbr.rel (%p451) target = $region88
        $region87: #{tpu_custom_call.1} parent=59 // pred_region
          %455 = dma.done [#allocation14], 4096
        $region88: #{tpu_custom_call.1} parent=59 // pred_fallthru
          _
        %p456 = pneg %p56
        %p457 = pneg %p53
        %p458 = pneg %p77
        %p459 = pneg %p74
        %p460 = pneg %p98
        %p461 = pneg %p95
        %p462 = pneg %p119
        %p463 = pneg %p116
        %p464 = pneg %p140
        %p465 = pneg %p137
        %p466 = pneg %p161
        %p467 = pneg %p158
        %p468 = pneg %p182
        %p469 = pneg %p179
        %p470 = pneg %p203
        %p471 = pneg %p200
        %p472 = pneg %p224
        %p473 = pneg %p221
        %p474 = pneg %p245
        %p475 = pneg %p242
        %p476 = pneg %p271
        %p477 = pneg %p268
        %s478 = sand.u32 %s258, 1
        %s479 = scalar_lea.sflag [#allocation6], %s478
        %s480 = sand.u32 %s258, 1
        %s481 = smul.addr %s480, 16
        %s482 = scalar_lea.vmem [#allocation16], %s481
        %p483 = pneg %p292
        %p484 = pneg %p289
        %p485 = scmp.eq.s32.totalorder %s40, 0
        // Predicated region
        $region89: #{tpu_custom_call.1} parent=59 // pred_check
          %p486 = pneg %p485
        $region90: #{tpu_custom_call.1} parent=59 // pred_check_branch
          %488 = sbr.rel (%p486) target = $region92
        $region91: #{tpu_custom_call.1} parent=59 // pred_region
          %v489 = vld [vmem:[#allocation7] sm:$0xff]
          %v490 = vld [vmem:[#allocation7 + $0x8] sm:$0xff]
          %491 = vst [vmem:[#allocation17] sm:$0xff] %v489
          %492 = vst [vmem:[#allocation17 + $0x8] sm:$0xff] %v490
        $region92: #{tpu_custom_call.1} parent=59 // pred_fallthru
          _
        %v493 = vld [vmem:[#allocation17] sm:$0xff]
        %v494 = vld [vmem:[#allocation17 + $0x8] sm:$0xff]
        %s495 = smul.u32 %s40, 128
        %s496 = sld [smem:[#allocation3 + %s495]]
        %s497 = sshra.s32 %s496, 3
        %s498 = sand.u32 %s496, 7
        %s499 = sshra.s32 %s496, 3
        %s500 = sand.u32 %s496, 7
        %s501 = smul.u32 %s497, 2
        %s502 = smul.u32 %s501, 8
        %s503 = sadd.s32 %s502, %s500
        %s504 = scalar_lea.vmem [#allocation4], %s503
        %v505 = vld [vmem:[%s504] ss:$8 sm:$0x3]
        %s506 = sadd.s32 %s495, 1
        %s507 = sld [smem:[#allocation3 + %s506]]
        %s508 = sshra.s32 %s507, 3
        %s509 = sand.u32 %s507, 7
        %s510 = sshra.s32 %s507, 3
        %s511 = sand.u32 %s507, 7
        %s512 = smul.u32 %s508, 2
        %s513 = smul.u32 %s512, 8
        %s514 = sadd.s32 %s513, %s511
        %s515 = scalar_lea.vmem [#allocation4], %s514
        %v516 = vld [vmem:[%s515] ss:$8 sm:$0x3]
        %s517 = sadd.s32 %s495, 2
        %s518 = sld [smem:[#allocation3 + %s517]]
        %s519 = sshra.s32 %s518, 3
        %s520 = sand.u32 %s518, 7
        %s521 = sshra.s32 %s518, 3
        %s522 = sand.u32 %s518, 7
        %s523 = smul.u32 %s519, 2
        %s524 = smul.u32 %s523, 8
        %s525 = sadd.s32 %s524, %s522
        %s526 = scalar_lea.vmem [#allocation4], %s525
        %v527 = vld [vmem:[%s526] ss:$8 sm:$0x3]
        %s528 = sadd.s32 %s495, 3
        %s529 = sld [smem:[#allocation3 + %s528]]
        %s530 = sshra.s32 %s529, 3
        %s531 = sand.u32 %s529, 7
        %s532 = sshra.s32 %s529, 3
        %s533 = sand.u32 %s529, 7
        %s534 = smul.u32 %s530, 2
        %s535 = smul.u32 %s534, 8
        %s536 = sadd.s32 %s535, %s533
        %s537 = scalar_lea.vmem [#allocation4], %s536
        %v538 = vld [vmem:[%s537] ss:$8 sm:$0x3]
        %s539 = sadd.s32 %s495, 4
        %s540 = sld [smem:[#allocation3 + %s539]]
        %s541 = sshra.s32 %s540, 3
        %s542 = sand.u32 %s540, 7
        %s543 = sshra.s32 %s540, 3
        %s544 = sand.u32 %s540, 7
        %s545 = smul.u32 %s541, 2
        %s546 = smul.u32 %s545, 8
        %s547 = sadd.s32 %s546, %s544
        %s548 = scalar_lea.vmem [#allocation4], %s547
        %v549 = vld [vmem:[%s548] ss:$8 sm:$0x3]
        %s550 = sadd.s32 %s495, 5
        %s551 = sld [smem:[#allocation3 + %s550]]
        %s552 = sshra.s32 %s551, 3
        %s553 = sand.u32 %s551, 7
        %s554 = sshra.s32 %s551, 3
        %s555 = sand.u32 %s551, 7
        %s556 = smul.u32 %s552, 2
        %s557 = smul.u32 %s556, 8
        %s558 = sadd.s32 %s557, %s555
        %s559 = scalar_lea.vmem [#allocation4], %s558
        %v560 = vld [vmem:[%s559] ss:$8 sm:$0x3]
        %s561 = sadd.s32 %s495, 6
        %s562 = sld [smem:[#allocation3 + %s561]]
        %s563 = sshra.s32 %s562, 3
        %s564 = sand.u32 %s562, 7
        %s565 = sshra.s32 %s562, 3
        %s566 = sand.u32 %s562, 7
        %s567 = smul.u32 %s563, 2
        %s568 = smul.u32 %s567, 8
        %s569 = sadd.s32 %s568, %s566
        %s570 = scalar_lea.vmem [#allocation4], %s569
        %v571 = vld [vmem:[%s570] ss:$8 sm:$0x3]
        %s572 = sadd.s32 %s495, 7
        %s573 = sld [smem:[#allocation3 + %s572]]
        %s574 = sshra.s32 %s573, 3
        %s575 = sand.u32 %s573, 7
        %s576 = sshra.s32 %s573, 3
        %s577 = sand.u32 %s573, 7
        %s578 = smul.u32 %s574, 2
        %s579 = smul.u32 %s578, 8
        %s580 = sadd.s32 %s579, %s577
        %s581 = scalar_lea.vmem [#allocation4], %s580
        %v582 = vld [vmem:[%s581] ss:$8 sm:$0x3]
        %v584 = vperm.slane %v505, 0
        %v585 = vperm.slane %v505, 1
        %v589 = vperm.slane %v516, 0
        %v590 = vperm.slane %v516, 1
        %v594 = vperm.slane %v527, 0
        %v595 = vperm.slane %v527, 1
        %v599 = vperm.slane %v538, 0
        %v600 = vperm.slane %v538, 1
        %v604 = vperm.slane %v549, 0
        %v605 = vperm.slane %v549, 1
        %v609 = vperm.slane %v560, 0
        %v610 = vperm.slane %v560, 1
        %v614 = vperm.slane %v571, 0
        %v615 = vperm.slane %v571, 1
        %v619 = vperm.slane %v582, 0
        %v620 = vperm.slane %v582, 1
        %vm623 = vcmask 1040384
        %v624 = vsel %vm623, %v584, %v589
        %v625 = vsel %vm623, %v585, %v590
        %vm626 = vcmask 1041408
        %v627 = vsel %vm626, %v624, %v594
        %v628 = vsel %vm626, %v625, %v595
        %vm629 = vcmask 1042432
        %v630 = vsel %vm629, %v627, %v599
        %v631 = vsel %vm629, %v628, %v600
        %vm632 = vcmask 1043456
        %v633 = vsel %vm632, %v630, %v604
        %v634 = vsel %vm632, %v631, %v605
        %vm635 = vcmask 1044480
        %v636 = vsel %vm635, %v633, %v609
        %v637 = vsel %vm635, %v634, %v610
        %vm638 = vcmask 1045504
        %v639 = vsel %vm638, %v636, %v614
        %v640 = vsel %vm638, %v637, %v615
        %vm641 = vcmask 1046528
        %v642 = vsel %vm641, %v639, %v619
        %v643 = vsel %vm641, %v640, %v620
        %v644 = vmax.f32 %v642, 0.0
        %v645 = vmax.f32 %v643, 0.0
        %v646 = vpack.c.bf16 %v645, %v644
        %v647 = vpack.c.bf16 %v494, %v493
        %v649 = vunpack.c.l.b16 %v646
        %v650 = vunpack.c.h.b16 %v646
        %v651 = vpack.c.b16 %v649, %v649
        %v652 = vpack.c.b16 %v650, %v650
        %v656 = vunpack.c.l.b16 %v647
        %v657 = vunpack.c.h.b16 %v647
        %v658 = vpack.c.b16 %v656, %v656
        %v659 = vpack.c.b16 %v657, %v657
        %v662 = vld [vmem:[#allocation9] sm:$0xff]
        %v663 = vld [vmem:[#allocation9 + $0x8] sm:$0xff]
        %v664 = vld [vmem:[#allocation9 + $0x10] sm:$0xff]
        %v665 = vld [vmem:[#allocation9 + $0x18] sm:$0xff]
        %v666 = vld [vmem:[#allocation9 + $0x20] sm:$0xff]
        %v667 = vld [vmem:[#allocation9 + $0x28] sm:$0xff]
        %v668 = vld [vmem:[#allocation9 + $0x30] sm:$0xff]
        %v669 = vld [vmem:[#allocation9 + $0x38] sm:$0xff]
        %v670 = vld [vmem:[#allocation9 + $0x40] sm:$0xff]
        %v671 = vld [vmem:[#allocation9 + $0x48] sm:$0xff]
        %v672 = vld [vmem:[#allocation9 + $0x50] sm:$0xff]
        %v673 = vld [vmem:[#allocation9 + $0x58] sm:$0xff]
        %v674 = vld [vmem:[#allocation9 + $0x60] sm:$0xff]
        %v675 = vld [vmem:[#allocation9 + $0x68] sm:$0xff]
        %v676 = vld [vmem:[#allocation9 + $0x70] sm:$0xff]
        %v677 = vld [vmem:[#allocation9 + $0x78] sm:$0xff]
        %v678 = vld [vmem:[#allocation9 + $0x80] sm:$0xff]
        %v679 = vld [vmem:[#allocation9 + $0x88] sm:$0xff]
        %v680 = vld [vmem:[#allocation9 + $0x90] sm:$0xff]
        %v681 = vld [vmem:[#allocation9 + $0x98] sm:$0xff]
        %v682 = vld [vmem:[#allocation9 + $0xa0] sm:$0xff]
        %v683 = vld [vmem:[#allocation9 + $0xa8] sm:$0xff]
        %v684 = vld [vmem:[#allocation9 + $0xb0] sm:$0xff]
        %v685 = vld [vmem:[#allocation9 + $0xb8] sm:$0xff]
        %v686 = vld [vmem:[#allocation9 + $0xc0] sm:$0xff]
        %v687 = vld [vmem:[#allocation9 + $0xc8] sm:$0xff]
        %v688 = vld [vmem:[#allocation9 + $0xd0] sm:$0xff]
        %v689 = vld [vmem:[#allocation9 + $0xd8] sm:$0xff]
        %v690 = vld [vmem:[#allocation9 + $0xe0] sm:$0xff]
        %v691 = vld [vmem:[#allocation9 + $0xe8] sm:$0xff]
        %v692 = vld [vmem:[#allocation9 + $0xf0] sm:$0xff]
        %v693 = vld [vmem:[#allocation9 + $0xf8] sm:$0xff]
        %v694 = vld [vmem:[#allocation9 + $0x100] sm:$0xff]
        %v695 = vld [vmem:[#allocation9 + $0x108] sm:$0xff]
        %v696 = vld [vmem:[#allocation9 + $0x110] sm:$0xff]
        %v697 = vld [vmem:[#allocation9 + $0x118] sm:$0xff]
        %v698 = vld [vmem:[#allocation9 + $0x120] sm:$0xff]
        %v699 = vld [vmem:[#allocation9 + $0x128] sm:$0xff]
        %v700 = vld [vmem:[#allocation9 + $0x130] sm:$0xff]
        %v701 = vld [vmem:[#allocation9 + $0x138] sm:$0xff]
        %v702 = vld [vmem:[#allocation9 + $0x140] sm:$0xff]
        %v703 = vld [vmem:[#allocation9 + $0x148] sm:$0xff]
        %v704 = vld [vmem:[#allocation9 + $0x150] sm:$0xff]
        %v705 = vld [vmem:[#allocation9 + $0x158] sm:$0xff]
        %v706 = vld [vmem:[#allocation9 + $0x160] sm:$0xff]
        %v707 = vld [vmem:[#allocation9 + $0x168] sm:$0xff]
        %v708 = vld [vmem:[#allocation9 + $0x170] sm:$0xff]
        %v709 = vld [vmem:[#allocation9 + $0x178] sm:$0xff]
        %v710 = vld [vmem:[#allocation9 + $0x180] sm:$0xff]
        %v711 = vld [vmem:[#allocation9 + $0x188] sm:$0xff]
        %v712 = vld [vmem:[#allocation9 + $0x190] sm:$0xff]
        %v713 = vld [vmem:[#allocation9 + $0x198] sm:$0xff]
        %v714 = vld [vmem:[#allocation9 + $0x1a0] sm:$0xff]
        %v715 = vld [vmem:[#allocation9 + $0x1a8] sm:$0xff]
        %v716 = vld [vmem:[#allocation9 + $0x1b0] sm:$0xff]
        %v717 = vld [vmem:[#allocation9 + $0x1b8] sm:$0xff]
        %v718 = vld [vmem:[#allocation9 + $0x1c0] sm:$0xff]
        %v719 = vld [vmem:[#allocation9 + $0x1c8] sm:$0xff]
        %v720 = vld [vmem:[#allocation9 + $0x1d0] sm:$0xff]
        %v721 = vld [vmem:[#allocation9 + $0x1d8] sm:$0xff]
        %v722 = vld [vmem:[#allocation9 + $0x1e0] sm:$0xff]
        %v723 = vld [vmem:[#allocation9 + $0x1e8] sm:$0xff]
        %v724 = vld [vmem:[#allocation9 + $0x1f0] sm:$0xff]
        %v725 = vld [vmem:[#allocation9 + $0x1f8] sm:$0xff]
        %v726 = vld [vmem:[#allocation9 + $0x200] sm:$0xff]
        %v727 = vld [vmem:[#allocation9 + $0x208] sm:$0xff]
        %v728 = vld [vmem:[#allocation9 + $0x210] sm:$0xff]
        %v729 = vld [vmem:[#allocation9 + $0x218] sm:$0xff]
        %v730 = vld [vmem:[#allocation9 + $0x220] sm:$0xff]
        %v731 = vld [vmem:[#allocation9 + $0x228] sm:$0xff]
        %v732 = vld [vmem:[#allocation9 + $0x230] sm:$0xff]
        %v733 = vld [vmem:[#allocation9 + $0x238] sm:$0xff]
        %v734 = vld [vmem:[#allocation9 + $0x240] sm:$0xff]
        %v735 = vld [vmem:[#allocation9 + $0x248] sm:$0xff]
        %v736 = vld [vmem:[#allocation9 + $0x250] sm:$0xff]
        %v737 = vld [vmem:[#allocation9 + $0x258] sm:$0xff]
        %v738 = vld [vmem:[#allocation9 + $0x260] sm:$0xff]
        %v739 = vld [vmem:[#allocation9 + $0x268] sm:$0xff]
        %v740 = vld [vmem:[#allocation9 + $0x270] sm:$0xff]
        %v741 = vld [vmem:[#allocation9 + $0x278] sm:$0xff]
        %v742 = vld [vmem:[#allocation9 + $0x280] sm:$0xff]
        %v743 = vld [vmem:[#allocation9 + $0x288] sm:$0xff]
        %v744 = vld [vmem:[#allocation9 + $0x290] sm:$0xff]
        %v745 = vld [vmem:[#allocation9 + $0x298] sm:$0xff]
        %v746 = vld [vmem:[#allocation9 + $0x2a0] sm:$0xff]
        %v747 = vld [vmem:[#allocation9 + $0x2a8] sm:$0xff]
        %v748 = vld [vmem:[#allocation9 + $0x2b0] sm:$0xff]
        %v749 = vld [vmem:[#allocation9 + $0x2b8] sm:$0xff]
        %v750 = vld [vmem:[#allocation9 + $0x2c0] sm:$0xff]
        %v751 = vld [vmem:[#allocation9 + $0x2c8] sm:$0xff]
        %v752 = vld [vmem:[#allocation9 + $0x2d0] sm:$0xff]
        %v753 = vld [vmem:[#allocation9 + $0x2d8] sm:$0xff]
        %v754 = vld [vmem:[#allocation9 + $0x2e0] sm:$0xff]
        %v755 = vld [vmem:[#allocation9 + $0x2e8] sm:$0xff]
        %v756 = vld [vmem:[#allocation9 + $0x2f0] sm:$0xff]
        %v757 = vld [vmem:[#allocation9 + $0x2f8] sm:$0xff]
        %v758 = vld [vmem:[#allocation9 + $0x300] sm:$0xff]
        %v759 = vld [vmem:[#allocation9 + $0x308] sm:$0xff]
        %v760 = vld [vmem:[#allocation9 + $0x310] sm:$0xff]
        %v761 = vld [vmem:[#allocation9 + $0x318] sm:$0xff]
        %v762 = vld [vmem:[#allocation9 + $0x320] sm:$0xff]
        %v763 = vld [vmem:[#allocation9 + $0x328] sm:$0xff]
        %v764 = vld [vmem:[#allocation9 + $0x330] sm:$0xff]
        %v765 = vld [vmem:[#allocation9 + $0x338] sm:$0xff]
        %v766 = vld [vmem:[#allocation9 + $0x340] sm:$0xff]
        %v767 = vld [vmem:[#allocation9 + $0x348] sm:$0xff]
        %v768 = vld [vmem:[#allocation9 + $0x350] sm:$0xff]
        %v769 = vld [vmem:[#allocation9 + $0x358] sm:$0xff]
        %v770 = vld [vmem:[#allocation9 + $0x360] sm:$0xff]
        %v771 = vld [vmem:[#allocation9 + $0x368] sm:$0xff]
        %v772 = vld [vmem:[#allocation9 + $0x370] sm:$0xff]
        %v773 = vld [vmem:[#allocation9 + $0x378] sm:$0xff]
        %v774 = vld [vmem:[#allocation9 + $0x380] sm:$0xff]
        %v775 = vld [vmem:[#allocation9 + $0x388] sm:$0xff]
        %v776 = vld [vmem:[#allocation9 + $0x390] sm:$0xff]
        %v777 = vld [vmem:[#allocation9 + $0x398] sm:$0xff]
        %v778 = vld [vmem:[#allocation9 + $0x3a0] sm:$0xff]
        %v779 = vld [vmem:[#allocation9 + $0x3a8] sm:$0xff]
        %v780 = vld [vmem:[#allocation9 + $0x3b0] sm:$0xff]
        %v781 = vld [vmem:[#allocation9 + $0x3b8] sm:$0xff]
        %v782 = vld [vmem:[#allocation9 + $0x3c0] sm:$0xff]
        %v783 = vld [vmem:[#allocation9 + $0x3c8] sm:$0xff]
        %v784 = vld [vmem:[#allocation9 + $0x3d0] sm:$0xff]
        %v785 = vld [vmem:[#allocation9 + $0x3d8] sm:$0xff]
        %v786 = vld [vmem:[#allocation9 + $0x3e0] sm:$0xff]
        %v787 = vld [vmem:[#allocation9 + $0x3e8] sm:$0xff]
        %v788 = vld [vmem:[#allocation9 + $0x3f0] sm:$0xff]
        %v789 = vld [vmem:[#allocation9 + $0x3f8] sm:$0xff]
        %v790 = vld [vmem:[%s6] sm:$0xf]
        %v792 = vperm.slane %v790, 0
        %v793 = vperm.slane %v790, 1
        %v794 = vperm.slane %v790, 2
        %v795 = vperm.slane %v790, 3
        %v928 = vunpack.c.l.b16 %v662
        %v929 = vunpack.c.h.b16 %v662
        %v930 = vunpack.c.l.b16 %v663
        %v931 = vunpack.c.h.b16 %v663
        %v932 = vunpack.c.l.b16 %v664
        %v933 = vunpack.c.h.b16 %v664
        %v934 = vunpack.c.l.b16 %v665
        %v935 = vunpack.c.h.b16 %v665
        %v936 = vunpack.c.l.b16 %v666
        %v937 = vunpack.c.h.b16 %v666
        %v938 = vunpack.c.l.b16 %v667
        %v939 = vunpack.c.h.b16 %v667
        %v940 = vunpack.c.l.b16 %v668
        %v941 = vunpack.c.h.b16 %v668
        %v942 = vunpack.c.l.b16 %v669
        %v943 = vunpack.c.h.b16 %v669
        %v944 = vunpack.c.l.b16 %v670
        %v945 = vunpack.c.h.b16 %v670
        %v946 = vunpack.c.l.b16 %v671
        %v947 = vunpack.c.h.b16 %v671
        %v948 = vunpack.c.l.b16 %v672
        %v949 = vunpack.c.h.b16 %v672
        %v950 = vunpack.c.l.b16 %v673
        %v951 = vunpack.c.h.b16 %v673
        %v952 = vunpack.c.l.b16 %v674
        %v953 = vunpack.c.h.b16 %v674
        %v954 = vunpack.c.l.b16 %v675
        %v955 = vunpack.c.h.b16 %v675
        %v956 = vunpack.c.l.b16 %v676
        %v957 = vunpack.c.h.b16 %v676
        %v958 = vunpack.c.l.b16 %v677
        %v959 = vunpack.c.h.b16 %v677
        %v960 = vunpack.c.l.b16 %v678
        %v961 = vunpack.c.h.b16 %v678
        %v962 = vunpack.c.l.b16 %v679
        %v963 = vunpack.c.h.b16 %v679
        %v964 = vunpack.c.l.b16 %v680
        %v965 = vunpack.c.h.b16 %v680
        %v966 = vunpack.c.l.b16 %v681
        %v967 = vunpack.c.h.b16 %v681
        %v968 = vunpack.c.l.b16 %v682
        %v969 = vunpack.c.h.b16 %v682
        %v970 = vunpack.c.l.b16 %v683
        %v971 = vunpack.c.h.b16 %v683
        %v972 = vunpack.c.l.b16 %v684
        %v973 = vunpack.c.h.b16 %v684
        %v974 = vunpack.c.l.b16 %v685
        %v975 = vunpack.c.h.b16 %v685
        %v976 = vunpack.c.l.b16 %v686
        %v977 = vunpack.c.h.b16 %v686
        %v978 = vunpack.c.l.b16 %v687
        %v979 = vunpack.c.h.b16 %v687
        %v980 = vunpack.c.l.b16 %v688
        %v981 = vunpack.c.h.b16 %v688
        %v982 = vunpack.c.l.b16 %v689
        %v983 = vunpack.c.h.b16 %v689
        %v984 = vunpack.c.l.b16 %v690
        %v985 = vunpack.c.h.b16 %v690
        %v986 = vunpack.c.l.b16 %v691
        %v987 = vunpack.c.h.b16 %v691
        %v988 = vunpack.c.l.b16 %v692
        %v989 = vunpack.c.h.b16 %v692
        %v990 = vunpack.c.l.b16 %v693
        %v991 = vunpack.c.h.b16 %v693
        %v992 = vunpack.c.l.b16 %v694
        %v993 = vunpack.c.h.b16 %v694
        %v994 = vunpack.c.l.b16 %v695
        %v995 = vunpack.c.h.b16 %v695
        %v996 = vunpack.c.l.b16 %v696
        %v997 = vunpack.c.h.b16 %v696
        %v998 = vunpack.c.l.b16 %v697
        %v999 = vunpack.c.h.b16 %v697
        %v1000 = vunpack.c.l.b16 %v698
        %v1001 = vunpack.c.h.b16 %v698
        %v1002 = vunpack.c.l.b16 %v699
        %v1003 = vunpack.c.h.b16 %v699
        %v1004 = vunpack.c.l.b16 %v700
        %v1005 = vunpack.c.h.b16 %v700
        %v1006 = vunpack.c.l.b16 %v701
        %v1007 = vunpack.c.h.b16 %v701
        %v1008 = vunpack.c.l.b16 %v702
        %v1009 = vunpack.c.h.b16 %v702
        %v1010 = vunpack.c.l.b16 %v703
        %v1011 = vunpack.c.h.b16 %v703
        %v1012 = vunpack.c.l.b16 %v704
        %v1013 = vunpack.c.h.b16 %v704
        %v1014 = vunpack.c.l.b16 %v705
        %v1015 = vunpack.c.h.b16 %v705
        %v1016 = vunpack.c.l.b16 %v706
        %v1017 = vunpack.c.h.b16 %v706
        %v1018 = vunpack.c.l.b16 %v707
        %v1019 = vunpack.c.h.b16 %v707
        %v1020 = vunpack.c.l.b16 %v708
        %v1021 = vunpack.c.h.b16 %v708
        %v1022 = vunpack.c.l.b16 %v709
        %v1023 = vunpack.c.h.b16 %v709
        %v1024 = vunpack.c.l.b16 %v710
        %v1025 = vunpack.c.h.b16 %v710
        %v1026 = vunpack.c.l.b16 %v711
        %v1027 = vunpack.c.h.b16 %v711
        %v1028 = vunpack.c.l.b16 %v712
        %v1029 = vunpack.c.h.b16 %v712
        %v1030 = vunpack.c.l.b16 %v713
        %v1031 = vunpack.c.h.b16 %v713
        %v1032 = vunpack.c.l.b16 %v714
        %v1033 = vunpack.c.h.b16 %v714
        %v1034 = vunpack.c.l.b16 %v715
        %v1035 = vunpack.c.h.b16 %v715
        %v1036 = vunpack.c.l.b16 %v716
        %v1037 = vunpack.c.h.b16 %v716
        %v1038 = vunpack.c.l.b16 %v717
        %v1039 = vunpack.c.h.b16 %v717
        %v1040 = vunpack.c.l.b16 %v718
        %v1041 = vunpack.c.h.b16 %v718
        %v1042 = vunpack.c.l.b16 %v719
        %v1043 = vunpack.c.h.b16 %v719
        %v1044 = vunpack.c.l.b16 %v720
        %v1045 = vunpack.c.h.b16 %v720
        %v1046 = vunpack.c.l.b16 %v721
        %v1047 = vunpack.c.h.b16 %v721
        %v1048 = vunpack.c.l.b16 %v722
        %v1049 = vunpack.c.h.b16 %v722
        %v1050 = vunpack.c.l.b16 %v723
        %v1051 = vunpack.c.h.b16 %v723
        %v1052 = vunpack.c.l.b16 %v724
        %v1053 = vunpack.c.h.b16 %v724
        %v1054 = vunpack.c.l.b16 %v725
        %v1055 = vunpack.c.h.b16 %v725
        %v1056 = vunpack.c.l.b16 %v726
        %v1057 = vunpack.c.h.b16 %v726
        %v1058 = vunpack.c.l.b16 %v727
        %v1059 = vunpack.c.h.b16 %v727
        %v1060 = vunpack.c.l.b16 %v728
        %v1061 = vunpack.c.h.b16 %v728
        %v1062 = vunpack.c.l.b16 %v729
        %v1063 = vunpack.c.h.b16 %v729
        %v1064 = vunpack.c.l.b16 %v730
        %v1065 = vunpack.c.h.b16 %v730
        %v1066 = vunpack.c.l.b16 %v731
        %v1067 = vunpack.c.h.b16 %v731
        %v1068 = vunpack.c.l.b16 %v732
        %v1069 = vunpack.c.h.b16 %v732
        %v1070 = vunpack.c.l.b16 %v733
        %v1071 = vunpack.c.h.b16 %v733
        %v1072 = vunpack.c.l.b16 %v734
        %v1073 = vunpack.c.h.b16 %v734
        %v1074 = vunpack.c.l.b16 %v735
        %v1075 = vunpack.c.h.b16 %v735
        %v1076 = vunpack.c.l.b16 %v736
        %v1077 = vunpack.c.h.b16 %v736
        %v1078 = vunpack.c.l.b16 %v737
        %v1079 = vunpack.c.h.b16 %v737
        %v1080 = vunpack.c.l.b16 %v738
        %v1081 = vunpack.c.h.b16 %v738
        %v1082 = vunpack.c.l.b16 %v739
        %v1083 = vunpack.c.h.b16 %v739
        %v1084 = vunpack.c.l.b16 %v740
        %v1085 = vunpack.c.h.b16 %v740
        %v1086 = vunpack.c.l.b16 %v741
        %v1087 = vunpack.c.h.b16 %v741
        %v1088 = vunpack.c.l.b16 %v742
        %v1089 = vunpack.c.h.b16 %v742
        %v1090 = vunpack.c.l.b16 %v743
        %v1091 = vunpack.c.h.b16 %v743
        %v1092 = vunpack.c.l.b16 %v744
        %v1093 = vunpack.c.h.b16 %v744
        %v1094 = vunpack.c.l.b16 %v745
        %v1095 = vunpack.c.h.b16 %v745
        %v1096 = vunpack.c.l.b16 %v746
        %v1097 = vunpack.c.h.b16 %v746
        %v1098 = vunpack.c.l.b16 %v747
        %v1099 = vunpack.c.h.b16 %v747
        %v1100 = vunpack.c.l.b16 %v748
        %v1101 = vunpack.c.h.b16 %v748
        %v1102 = vunpack.c.l.b16 %v749
        %v1103 = vunpack.c.h.b16 %v749
        %v1104 = vunpack.c.l.b16 %v750
        %v1105 = vunpack.c.h.b16 %v750
        %v1106 = vunpack.c.l.b16 %v751
        %v1107 = vunpack.c.h.b16 %v751
        %v1108 = vunpack.c.l.b16 %v752
        %v1109 = vunpack.c.h.b16 %v752
        %v1110 = vunpack.c.l.b16 %v753
        %v1111 = vunpack.c.h.b16 %v753
        %v1112 = vunpack.c.l.b16 %v754
        %v1113 = vunpack.c.h.b16 %v754
        %v1114 = vunpack.c.l.b16 %v755
        %v1115 = vunpack.c.h.b16 %v755
        %v1116 = vunpack.c.l.b16 %v756
        %v1117 = vunpack.c.h.b16 %v756
        %v1118 = vunpack.c.l.b16 %v757
        %v1119 = vunpack.c.h.b16 %v757
        %v1120 = vunpack.c.l.b16 %v758
        %v1121 = vunpack.c.h.b16 %v758
        %v1122 = vunpack.c.l.b16 %v759
        %v1123 = vunpack.c.h.b16 %v759
        %v1124 = vunpack.c.l.b16 %v760
        %v1125 = vunpack.c.h.b16 %v760
        %v1126 = vunpack.c.l.b16 %v761
        %v1127 = vunpack.c.h.b16 %v761
        %v1128 = vunpack.c.l.b16 %v762
        %v1129 = vunpack.c.h.b16 %v762
        %v1130 = vunpack.c.l.b16 %v763
        %v1131 = vunpack.c.h.b16 %v763
        %v1132 = vunpack.c.l.b16 %v764
        %v1133 = vunpack.c.h.b16 %v764
        %v1134 = vunpack.c.l.b16 %v765
        %v1135 = vunpack.c.h.b16 %v765
        %v1136 = vunpack.c.l.b16 %v766
        %v1137 = vunpack.c.h.b16 %v766
        %v1138 = vunpack.c.l.b16 %v767
        %v1139 = vunpack.c.h.b16 %v767
        %v1140 = vunpack.c.l.b16 %v768
        %v1141 = vunpack.c.h.b16 %v768
        %v1142 = vunpack.c.l.b16 %v769
        %v1143 = vunpack.c.h.b16 %v769
        %v1144 = vunpack.c.l.b16 %v770
        %v1145 = vunpack.c.h.b16 %v770
        %v1146 = vunpack.c.l.b16 %v771
        %v1147 = vunpack.c.h.b16 %v771
        %v1148 = vunpack.c.l.b16 %v772
        %v1149 = vunpack.c.h.b16 %v772
        %v1150 = vunpack.c.l.b16 %v773
        %v1151 = vunpack.c.h.b16 %v773
        %v1152 = vunpack.c.l.b16 %v774
        %v1153 = vunpack.c.h.b16 %v774
        %v1154 = vunpack.c.l.b16 %v775
        %v1155 = vunpack.c.h.b16 %v775
        %v1156 = vunpack.c.l.b16 %v776
        %v1157 = vunpack.c.h.b16 %v776
        %v1158 = vunpack.c.l.b16 %v777
        %v1159 = vunpack.c.h.b16 %v777
        %v1160 = vunpack.c.l.b16 %v778
        %v1161 = vunpack.c.h.b16 %v778
        %v1162 = vunpack.c.l.b16 %v779
        %v1163 = vunpack.c.h.b16 %v779
        %v1164 = vunpack.c.l.b16 %v780
        %v1165 = vunpack.c.h.b16 %v780
        %v1166 = vunpack.c.l.b16 %v781
        %v1167 = vunpack.c.h.b16 %v781
        %v1168 = vunpack.c.l.b16 %v782
        %v1169 = vunpack.c.h.b16 %v782
        %v1170 = vunpack.c.l.b16 %v783
        %v1171 = vunpack.c.h.b16 %v783
        %v1172 = vunpack.c.l.b16 %v784
        %v1173 = vunpack.c.h.b16 %v784
        %v1174 = vunpack.c.l.b16 %v785
        %v1175 = vunpack.c.h.b16 %v785
        %v1176 = vunpack.c.l.b16 %v786
        %v1177 = vunpack.c.h.b16 %v786
        %v1178 = vunpack.c.l.b16 %v787
        %v1179 = vunpack.c.h.b16 %v787
        %v1180 = vunpack.c.l.b16 %v788
        %v1181 = vunpack.c.h.b16 %v788
        %v1182 = vunpack.c.l.b16 %v789
        %v1183 = vunpack.c.h.b16 %v789
        %v1184 = vpack.c.b16 %v932, %v928
        %v1185 = vpack.c.b16 %v933, %v929
        %v1186 = vpack.c.b16 %v934, %v930
        %v1187 = vpack.c.b16 %v935, %v931
        %v1188 = vpack.c.b16 %v940, %v936
        %v1189 = vpack.c.b16 %v941, %v937
        %v1190 = vpack.c.b16 %v942, %v938
        %v1191 = vpack.c.b16 %v943, %v939
        %v1192 = vpack.c.b16 %v948, %v944
        %v1193 = vpack.c.b16 %v949, %v945
        %v1194 = vpack.c.b16 %v950, %v946
        %v1195 = vpack.c.b16 %v951, %v947
        %v1196 = vpack.c.b16 %v956, %v952
        %v1197 = vpack.c.b16 %v957, %v953
        %v1198 = vpack.c.b16 %v958, %v954
        %v1199 = vpack.c.b16 %v959, %v955
        %v1200 = vpack.c.b16 %v964, %v960
        %v1201 = vpack.c.b16 %v965, %v961
        %v1202 = vpack.c.b16 %v966, %v962
        %v1203 = vpack.c.b16 %v967, %v963
        %v1204 = vpack.c.b16 %v972, %v968
        %v1205 = vpack.c.b16 %v973, %v969
        %v1206 = vpack.c.b16 %v974, %v970
        %v1207 = vpack.c.b16 %v975, %v971
        %v1208 = vpack.c.b16 %v980, %v976
        %v1209 = vpack.c.b16 %v981, %v977
        %v1210 = vpack.c.b16 %v982, %v978
        %v1211 = vpack.c.b16 %v983, %v979
        %v1212 = vpack.c.b16 %v988, %v984
        %v1213 = vpack.c.b16 %v989, %v985
        %v1214 = vpack.c.b16 %v990, %v986
        %v1215 = vpack.c.b16 %v991, %v987
        %v1216 = vpack.c.b16 %v996, %v992
        %v1217 = vpack.c.b16 %v997, %v993
        %v1218 = vpack.c.b16 %v998, %v994
        %v1219 = vpack.c.b16 %v999, %v995
        %v1220 = vpack.c.b16 %v1004, %v1000
        %v1221 = vpack.c.b16 %v1005, %v1001
        %v1222 = vpack.c.b16 %v1006, %v1002
        %v1223 = vpack.c.b16 %v1007, %v1003
        %v1224 = vpack.c.b16 %v1012, %v1008
        %v1225 = vpack.c.b16 %v1013, %v1009
        %v1226 = vpack.c.b16 %v1014, %v1010
        %v1227 = vpack.c.b16 %v1015, %v1011
        %v1228 = vpack.c.b16 %v1020, %v1016
        %v1229 = vpack.c.b16 %v1021, %v1017
        %v1230 = vpack.c.b16 %v1022, %v1018
        %v1231 = vpack.c.b16 %v1023, %v1019
        %v1232 = vpack.c.b16 %v1028, %v1024
        %v1233 = vpack.c.b16 %v1029, %v1025
        %v1234 = vpack.c.b16 %v1030, %v1026
        %v1235 = vpack.c.b16 %v1031, %v1027
        %v1236 = vpack.c.b16 %v1036, %v1032
        %v1237 = vpack.c.b16 %v1037, %v1033
        %v1238 = vpack.c.b16 %v1038, %v1034
        %v1239 = vpack.c.b16 %v1039, %v1035
        %v1240 = vpack.c.b16 %v1044, %v1040
        %v1241 = vpack.c.b16 %v1045, %v1041
        %v1242 = vpack.c.b16 %v1046, %v1042
        %v1243 = vpack.c.b16 %v1047, %v1043
        %v1244 = vpack.c.b16 %v1052, %v1048
        %v1245 = vpack.c.b16 %v1053, %v1049
        %v1246 = vpack.c.b16 %v1054, %v1050
        %v1247 = vpack.c.b16 %v1055, %v1051
        %v1248 = vpack.c.b16 %v1060, %v1056
        %v1249 = vpack.c.b16 %v1061, %v1057
        %v1250 = vpack.c.b16 %v1062, %v1058
        %v1251 = vpack.c.b16 %v1063, %v1059
        %v1252 = vpack.c.b16 %v1068, %v1064
        %v1253 = vpack.c.b16 %v1069, %v1065
        %v1254 = vpack.c.b16 %v1070, %v1066
        %v1255 = vpack.c.b16 %v1071, %v1067
        %v1256 = vpack.c.b16 %v1076, %v1072
        %v1257 = vpack.c.b16 %v1077, %v1073
        %v1258 = vpack.c.b16 %v1078, %v1074
        %v1259 = vpack.c.b16 %v1079, %v1075
        %v1260 = vpack.c.b16 %v1084, %v1080
        %v1261 = vpack.c.b16 %v1085, %v1081
        %v1262 = vpack.c.b16 %v1086, %v1082
        %v1263 = vpack.c.b16 %v1087, %v1083
        %v1264 = vpack.c.b16 %v1092, %v1088
        %v1265 = vpack.c.b16 %v1093, %v1089
        %v1266 = vpack.c.b16 %v1094, %v1090
        %v1267 = vpack.c.b16 %v1095, %v1091
        %v1268 = vpack.c.b16 %v1100, %v1096
        %v1269 = vpack.c.b16 %v1101, %v1097
        %v1270 = vpack.c.b16 %v1102, %v1098
        %v1271 = vpack.c.b16 %v1103, %v1099
        %v1272 = vpack.c.b16 %v1108, %v1104
        %v1273 = vpack.c.b16 %v1109, %v1105
        %v1274 = vpack.c.b16 %v1110, %v1106
        %v1275 = vpack.c.b16 %v1111, %v1107
        %v1276 = vpack.c.b16 %v1116, %v1112
        %v1277 = vpack.c.b16 %v1117, %v1113
        %v1278 = vpack.c.b16 %v1118, %v1114
        %v1279 = vpack.c.b16 %v1119, %v1115
        %v1280 = vpack.c.b16 %v1124, %v1120
        %v1281 = vpack.c.b16 %v1125, %v1121
        %v1282 = vpack.c.b16 %v1126, %v1122
        %v1283 = vpack.c.b16 %v1127, %v1123
        %v1284 = vpack.c.b16 %v1132, %v1128
        %v1285 = vpack.c.b16 %v1133, %v1129
        %v1286 = vpack.c.b16 %v1134, %v1130
        %v1287 = vpack.c.b16 %v1135, %v1131
        %v1288 = vpack.c.b16 %v1140, %v1136
        %v1289 = vpack.c.b16 %v1141, %v1137
        %v1290 = vpack.c.b16 %v1142, %v1138
        %v1291 = vpack.c.b16 %v1143, %v1139
        %v1292 = vpack.c.b16 %v1148, %v1144
        %v1293 = vpack.c.b16 %v1149, %v1145
        %v1294 = vpack.c.b16 %v1150, %v1146
        %v1295 = vpack.c.b16 %v1151, %v1147
        %v1296 = vpack.c.b16 %v1156, %v1152
        %v1297 = vpack.c.b16 %v1157, %v1153
        %v1298 = vpack.c.b16 %v1158, %v1154
        %v1299 = vpack.c.b16 %v1159, %v1155
        %v1300 = vpack.c.b16 %v1164, %v1160
        %v1301 = vpack.c.b16 %v1165, %v1161
        %v1302 = vpack.c.b16 %v1166, %v1162
        %v1303 = vpack.c.b16 %v1167, %v1163
        %v1304 = vpack.c.b16 %v1172, %v1168
        %v1305 = vpack.c.b16 %v1173, %v1169
        %v1306 = vpack.c.b16 %v1174, %v1170
        %v1307 = vpack.c.b16 %v1175, %v1171
        %v1308 = vpack.c.b16 %v1180, %v1176
        %v1309 = vpack.c.b16 %v1181, %v1177
        %v1310 = vpack.c.b16 %v1182, %v1178
        %v1311 = vpack.c.b16 %v1183, %v1179
        %1440 = vmatpush.bf16.msra.mxu0 %v1212
        %1441 = vmatpush.bf16.msra.mxu0 %v1208
        %1442 = vmatpush.bf16.msra.mxu0 %v1204
        %1443 = vmatpush.bf16.msra.mxu0 %v1200
        %1444 = vmatpush.bf16.msra.mxu0 %v1196
        %1445 = vmatpush.bf16.msra.mxu0 %v1192
        %1446 = vmatpush.bf16.msra.mxu0 %v1188
        %1447 = vmatpush.bf16.msra.mxu0 %v1184
        %1448 = vmatmul.bf16.gmra.mxu0 %v651
        %v1449 = vpop.f32.mrf.mxu0
        %v1450 = vadd.f32 %v792, %v1449
        %v1451 = vpop.f32.mrf.mxu0
        %1452 = vdwg.mxu0
        %1453 = vmatpush.bf16.msra.mxu0 %v1244
        %1454 = vmatpush.bf16.msra.mxu0 %v1240
        %1455 = vmatpush.bf16.msra.mxu0 %v1236
        %1456 = vmatpush.bf16.msra.mxu0 %v1232
        %1457 = vmatpush.bf16.msra.mxu0 %v1228
        %1458 = vmatpush.bf16.msra.mxu0 %v1224
        %1459 = vmatpush.bf16.msra.mxu0 %v1220
        %1460 = vmatpush.bf16.msra.mxu0 %v1216
        %1461 = vmatmul.bf16.gmra.mxu0 %v652
        %v1462 = vpop.f32.mrf.mxu0
        %v1463 = vadd.f32 %v1450, %v1462
        %v1464 = vpop.f32.mrf.mxu0
        %1465 = vdwg.mxu0
        %1466 = vmatpush.bf16.msra.mxu0 %v1276
        %1467 = vmatpush.bf16.msra.mxu0 %v1272
        %1468 = vmatpush.bf16.msra.mxu0 %v1268
        %1469 = vmatpush.bf16.msra.mxu0 %v1264
        %1470 = vmatpush.bf16.msra.mxu0 %v1260
        %1471 = vmatpush.bf16.msra.mxu0 %v1256
        %1472 = vmatpush.bf16.msra.mxu0 %v1252
        %1473 = vmatpush.bf16.msra.mxu0 %v1248
        %1474 = vmatmul.bf16.gmra.mxu0 %v658
        %v1475 = vpop.f32.mrf.mxu0
        %v1476 = vadd.f32 %v1463, %v1475
        %v1477 = vpop.f32.mrf.mxu0
        %1478 = vdwg.mxu0
        %1479 = vmatpush.bf16.msra.mxu0 %v1308
        %1480 = vmatpush.bf16.msra.mxu0 %v1304
        %1481 = vmatpush.bf16.msra.mxu0 %v1300
        %1482 = vmatpush.bf16.msra.mxu0 %v1296
        %1483 = vmatpush.bf16.msra.mxu0 %v1292
        %1484 = vmatpush.bf16.msra.mxu0 %v1288
        %1485 = vmatpush.bf16.msra.mxu0 %v1284
        %1486 = vmatpush.bf16.msra.mxu0 %v1280
        %1487 = vmatmul.bf16.gmra.mxu0 %v659
        %v1488 = vpop.f32.mrf.mxu0
        %v1489 = vadd.f32 %v1476, %v1488
        %v1490 = vpop.f32.mrf.mxu0
        %1491 = vdwg.mxu0
        %1492 = vmatpush.bf16.msra.mxu0 %v1213
        %1493 = vmatpush.bf16.msra.mxu0 %v1209
        %1494 = vmatpush.bf16.msra.mxu0 %v1205
        %1495 = vmatpush.bf16.msra.mxu0 %v1201
        %1496 = vmatpush.bf16.msra.mxu0 %v1197
        %1497 = vmatpush.bf16.msra.mxu0 %v1193
        %1498 = vmatpush.bf16.msra.mxu0 %v1189
        %1499 = vmatpush.bf16.msra.mxu0 %v1185
        %1500 = vmatmul.bf16.gmra.mxu0 %v651
        %v1501 = vpop.f32.mrf.mxu0
        %v1502 = vadd.f32 %v793, %v1501
        %v1503 = vpop.f32.mrf.mxu0
        %1504 = vdwg.mxu0
        %1505 = vmatpush.bf16.msra.mxu0 %v1245
        %1506 = vmatpush.bf16.msra.mxu0 %v1241
        %1507 = vmatpush.bf16.msra.mxu0 %v1237
        %1508 = vmatpush.bf16.msra.mxu0 %v1233
        %1509 = vmatpush.bf16.msra.mxu0 %v1229
        %1510 = vmatpush.bf16.msra.mxu0 %v1225
        %1511 = vmatpush.bf16.msra.mxu0 %v1221
        %1512 = vmatpush.bf16.msra.mxu0 %v1217
        %1513 = vmatmul.bf16.gmra.mxu0 %v652
        %v1514 = vpop.f32.mrf.mxu0
        %v1515 = vadd.f32 %v1502, %v1514
        %v1516 = vpop.f32.mrf.mxu0
        %1517 = vdwg.mxu0
        %1518 = vmatpush.bf16.msra.mxu0 %v1277
        %1519 = vmatpush.bf16.msra.mxu0 %v1273
        %1520 = vmatpush.bf16.msra.mxu0 %v1269
        %1521 = vmatpush.bf16.msra.mxu0 %v1265
        %1522 = vmatpush.bf16.msra.mxu0 %v1261
        %1523 = vmatpush.bf16.msra.mxu0 %v1257
        %1524 = vmatpush.bf16.msra.mxu0 %v1253
        %1525 = vmatpush.bf16.msra.mxu0 %v1249
        %1526 = vmatmul.bf16.gmra.mxu0 %v658
        %v1527 = vpop.f32.mrf.mxu0
        %v1528 = vadd.f32 %v1515, %v1527
        %v1529 = vpop.f32.mrf.mxu0
        %1530 = vdwg.mxu0
        %1531 = vmatpush.bf16.msra.mxu0 %v1309
        %1532 = vmatpush.bf16.msra.mxu0 %v1305
        %1533 = vmatpush.bf16.msra.mxu0 %v1301
        %1534 = vmatpush.bf16.msra.mxu0 %v1297
        %1535 = vmatpush.bf16.msra.mxu0 %v1293
        %1536 = vmatpush.bf16.msra.mxu0 %v1289
        %1537 = vmatpush.bf16.msra.mxu0 %v1285
        %1538 = vmatpush.bf16.msra.mxu0 %v1281
        %1539 = vmatmul.bf16.gmra.mxu0 %v659
        %v1540 = vpop.f32.mrf.mxu0
        %v1541 = vadd.f32 %v1528, %v1540
        %v1542 = vpop.f32.mrf.mxu0
        %1543 = vdwg.mxu0
        %1544 = vmatpush.bf16.msra.mxu0 %v1214
        %1545 = vmatpush.bf16.msra.mxu0 %v1210
        %1546 = vmatpush.bf16.msra.mxu0 %v1206
        %1547 = vmatpush.bf16.msra.mxu0 %v1202
        %1548 = vmatpush.bf16.msra.mxu0 %v1198
        %1549 = vmatpush.bf16.msra.mxu0 %v1194
        %1550 = vmatpush.bf16.msra.mxu0 %v1190
        %1551 = vmatpush.bf16.msra.mxu0 %v1186
        %1552 = vmatmul.bf16.gmra.mxu0 %v651
        %v1553 = vpop.f32.mrf.mxu0
        %v1554 = vadd.f32 %v794, %v1553
        %v1555 = vpop.f32.mrf.mxu0
        %1556 = vdwg.mxu0
        %1557 = vmatpush.bf16.msra.mxu0 %v1246
        %1558 = vmatpush.bf16.msra.mxu0 %v1242
        %1559 = vmatpush.bf16.msra.mxu0 %v1238
        %1560 = vmatpush.bf16.msra.mxu0 %v1234
        %1561 = vmatpush.bf16.msra.mxu0 %v1230
        %1562 = vmatpush.bf16.msra.mxu0 %v1226
        %1563 = vmatpush.bf16.msra.mxu0 %v1222
        %1564 = vmatpush.bf16.msra.mxu0 %v1218
        %1565 = vmatmul.bf16.gmra.mxu0 %v652
        %v1566 = vpop.f32.mrf.mxu0
        %v1567 = vadd.f32 %v1554, %v1566
        %v1568 = vpop.f32.mrf.mxu0
        %1569 = vdwg.mxu0
        %1570 = vmatpush.bf16.msra.mxu0 %v1278
        %1571 = vmatpush.bf16.msra.mxu0 %v1274
        %1572 = vmatpush.bf16.msra.mxu0 %v1270
        %1573 = vmatpush.bf16.msra.mxu0 %v1266
        %1574 = vmatpush.bf16.msra.mxu0 %v1262
        %1575 = vmatpush.bf16.msra.mxu0 %v1258
        %1576 = vmatpush.bf16.msra.mxu0 %v1254
        %1577 = vmatpush.bf16.msra.mxu0 %v1250
        %1578 = vmatmul.bf16.gmra.mxu0 %v658
        %v1579 = vpop.f32.mrf.mxu0
        %v1580 = vadd.f32 %v1567, %v1579
        %v1581 = vpop.f32.mrf.mxu0
        %1582 = vdwg.mxu0
        %1583 = vmatpush.bf16.msra.mxu0 %v1310
        %1584 = vmatpush.bf16.msra.mxu0 %v1306
        %1585 = vmatpush.bf16.msra.mxu0 %v1302
        %1586 = vmatpush.bf16.msra.mxu0 %v1298
        %1587 = vmatpush.bf16.msra.mxu0 %v1294
        %1588 = vmatpush.bf16.msra.mxu0 %v1290
        %1589 = vmatpush.bf16.msra.mxu0 %v1286
        %1590 = vmatpush.bf16.msra.mxu0 %v1282
        %1591 = vmatmul.bf16.gmra.mxu0 %v659
        %v1592 = vpop.f32.mrf.mxu0
        %v1593 = vadd.f32 %v1580, %v1592
        %v1594 = vpop.f32.mrf.mxu0
        %1595 = vdwg.mxu0
        %1596 = vmatpush.bf16.msra.mxu0 %v1215
        %1597 = vmatpush.bf16.msra.mxu0 %v1211
        %1598 = vmatpush.bf16.msra.mxu0 %v1207
        %1599 = vmatpush.bf16.msra.mxu0 %v1203
        %1600 = vmatpush.bf16.msra.mxu0 %v1199
        %1601 = vmatpush.bf16.msra.mxu0 %v1195
        %1602 = vmatpush.bf16.msra.mxu0 %v1191
        %1603 = vmatpush.bf16.msra.mxu0 %v1187
        %1604 = vmatmul.bf16.gmra.mxu0 %v651
        %v1605 = vpop.f32.mrf.mxu0
        %v1606 = vadd.f32 %v795, %v1605
        %v1607 = vpop.f32.mrf.mxu0
        %1608 = vdwg.mxu0
        %1609 = vmatpush.bf16.msra.mxu0 %v1247
        %1610 = vmatpush.bf16.msra.mxu0 %v1243
        %1611 = vmatpush.bf16.msra.mxu0 %v1239
        %1612 = vmatpush.bf16.msra.mxu0 %v1235
        %1613 = vmatpush.bf16.msra.mxu0 %v1231
        %1614 = vmatpush.bf16.msra.mxu0 %v1227
        %1615 = vmatpush.bf16.msra.mxu0 %v1223
        %1616 = vmatpush.bf16.msra.mxu0 %v1219
        %1617 = vmatmul.bf16.gmra.mxu0 %v652
        %v1618 = vpop.f32.mrf.mxu0
        %v1619 = vadd.f32 %v1606, %v1618
        %v1620 = vpop.f32.mrf.mxu0
        %1621 = vdwg.mxu0
        %1622 = vmatpush.bf16.msra.mxu0 %v1279
        %1623 = vmatpush.bf16.msra.mxu0 %v1275
        %1624 = vmatpush.bf16.msra.mxu0 %v1271
        %1625 = vmatpush.bf16.msra.mxu0 %v1267
        %1626 = vmatpush.bf16.msra.mxu0 %v1263
        %1627 = vmatpush.bf16.msra.mxu0 %v1259
        %1628 = vmatpush.bf16.msra.mxu0 %v1255
        %1629 = vmatpush.bf16.msra.mxu0 %v1251
        %1630 = vmatmul.bf16.gmra.mxu0 %v658
        %v1631 = vpop.f32.mrf.mxu0
        %v1632 = vadd.f32 %v1619, %v1631
        %v1633 = vpop.f32.mrf.mxu0
        %1634 = vdwg.mxu0
        %1635 = vmatpush.bf16.msra.mxu0 %v1311
        %1636 = vmatpush.bf16.msra.mxu0 %v1307
        %1637 = vmatpush.bf16.msra.mxu0 %v1303
        %1638 = vmatpush.bf16.msra.mxu0 %v1299
        %1639 = vmatpush.bf16.msra.mxu0 %v1295
        %1640 = vmatpush.bf16.msra.mxu0 %v1291
        %1641 = vmatpush.bf16.msra.mxu0 %v1287
        %1642 = vmatpush.bf16.msra.mxu0 %v1283
        %1643 = vmatmul.bf16.gmra.mxu0 %v659
        %v1644 = vpop.f32.mrf.mxu0
        %v1645 = vadd.f32 %v1632, %v1644
        %v1646 = vpop.f32.mrf.mxu0
        %1647 = vdwg.mxu0
        %v1648 = vxor.u32 %v1489, 2147483648
        %v1649 = vxor.u32 %v1541, 2147483648
        %v1650 = vmul.f32 %v1648, 1.442695
        %v1651 = vpow.pop %v1650
        %v1652 = vmul.f32 %v1649, 1.442695
        %v1653 = vpow.pop %v1652
        %v1654 = vadd.f32 %v1651, 1.0
        %v1655 = vadd.f32 %v1653, 1.0
        %v1656 = vrcp.pop %v1654
        %v1657 = vmul.f32 %v1654, %v1656
        %v1658 = vsub.f32 1.0, %v1657
        %v1659 = vmul.f32 %v1656, %v1658
        %v1660 = vadd.f32 %v1656, %v1659
        %vm1661 = vweird.f32 %v1654
        %vm1662 = vweird.f32 %v1656
        %vm1663 = vmor %vm1661, %vm1662
        %v1664 = vsel %vm1663, %v1656, %v1660
        %v1665 = vand.u32 2147483647, %v1654
        %vm1666 = vcmp.eq.f32.partialorder %v1665, 8.507059e+37
        %v1667 = vand.u32 %v1654, 2147483648
        %v1668 = vor.u32 1.1754944e-38, %v1667
        %v1669 = vsel %vm1666, %v1668, %v1664
        %v1670 = vmul.f32 1.0, %v1669
        %v1671 = vrcp.pop %v1655
        %v1672 = vmul.f32 %v1655, %v1671
        %v1673 = vsub.f32 1.0, %v1672
        %v1674 = vmul.f32 %v1671, %v1673
        %v1675 = vadd.f32 %v1671, %v1674
        %vm1676 = vweird.f32 %v1655
        %vm1677 = vweird.f32 %v1671
        %vm1678 = vmor %vm1676, %vm1677
        %v1679 = vsel %vm1678, %v1671, %v1675
        %v1680 = vand.u32 2147483647, %v1655
        %vm1681 = vcmp.eq.f32.partialorder %v1680, 8.507059e+37
        %v1682 = vand.u32 %v1655, 2147483648
        %v1683 = vor.u32 1.1754944e-38, %v1682
        %v1684 = vsel %vm1681, %v1683, %v1679
        %v1685 = vmul.f32 1.0, %v1684
        %v1686 = vxor.u32 %v1593, 2147483648
        %v1687 = vxor.u32 %v1645, 2147483648
        %v1688 = vmul.f32 %v1686, 1.442695
        %v1689 = vpow.pop %v1688
        %v1690 = vmul.f32 %v1687, 1.442695
        %v1691 = vpow.pop %v1690
        %v1692 = vadd.f32 %v1689, 1.0
        %v1693 = vadd.f32 %v1691, 1.0
        %v1694 = vrcp.pop %v1692
        %v1695 = vmul.f32 %v1692, %v1694
        %v1696 = vsub.f32 1.0, %v1695
        %v1697 = vmul.f32 %v1694, %v1696
        %v1698 = vadd.f32 %v1694, %v1697
        %vm1699 = vweird.f32 %v1692
        %vm1700 = vweird.f32 %v1694
        %vm1701 = vmor %vm1699, %vm1700
        %v1702 = vsel %vm1701, %v1694, %v1698
        %v1703 = vand.u32 2147483647, %v1692
        %vm1704 = vcmp.eq.f32.partialorder %v1703, 8.507059e+37
        %v1705 = vand.u32 %v1692, 2147483648
        %v1706 = vor.u32 1.1754944e-38, %v1705
        %v1707 = vsel %vm1704, %v1706, %v1702
        %v1708 = vmul.f32 1.0, %v1707
        %v1709 = vrcp.pop %v1693
        %v1710 = vmul.f32 %v1693, %v1709
        %v1711 = vsub.f32 1.0, %v1710
        %v1712 = vmul.f32 %v1709, %v1711
        %v1713 = vadd.f32 %v1709, %v1712
        %vm1714 = vweird.f32 %v1693
        %vm1715 = vweird.f32 %v1709
        %vm1716 = vmor %vm1714, %vm1715
        %v1717 = vsel %vm1716, %v1709, %v1713
        %v1718 = vand.u32 2147483647, %v1693
        %vm1719 = vcmp.eq.f32.partialorder %v1718, 8.507059e+37
        %v1720 = vand.u32 %v1693, 2147483648
        %v1721 = vor.u32 1.1754944e-38, %v1720
        %v1722 = vsel %vm1719, %v1721, %v1717
        %v1723 = vmul.f32 1.0, %v1722
        %v1724 = vld [vmem:[#allocation10] sm:$0xff]
        %v1725 = vld [vmem:[#allocation10 + $0x8] sm:$0xff]
        %v1726 = vld [vmem:[#allocation10 + $0x10] sm:$0xff]
        %v1727 = vld [vmem:[#allocation10 + $0x18] sm:$0xff]
        %v1728 = vld [vmem:[#allocation10 + $0x20] sm:$0xff]
        %v1729 = vld [vmem:[#allocation10 + $0x28] sm:$0xff]
        %v1730 = vld [vmem:[#allocation10 + $0x30] sm:$0xff]
        %v1731 = vld [vmem:[#allocation10 + $0x38] sm:$0xff]
        %v1732 = vld [vmem:[#allocation10 + $0x40] sm:$0xff]
        %v1733 = vld [vmem:[#allocation10 + $0x48] sm:$0xff]
        %v1734 = vld [vmem:[#allocation10 + $0x50] sm:$0xff]
        %v1735 = vld [vmem:[#allocation10 + $0x58] sm:$0xff]
        %v1736 = vld [vmem:[#allocation10 + $0x60] sm:$0xff]
        %v1737 = vld [vmem:[#allocation10 + $0x68] sm:$0xff]
        %v1738 = vld [vmem:[#allocation10 + $0x70] sm:$0xff]
        %v1739 = vld [vmem:[#allocation10 + $0x78] sm:$0xff]
        %v1740 = vld [vmem:[#allocation10 + $0x80] sm:$0xff]
        %v1741 = vld [vmem:[#allocation10 + $0x88] sm:$0xff]
        %v1742 = vld [vmem:[#allocation10 + $0x90] sm:$0xff]
        %v1743 = vld [vmem:[#allocation10 + $0x98] sm:$0xff]
        %v1744 = vld [vmem:[#allocation10 + $0xa0] sm:$0xff]
        %v1745 = vld [vmem:[#allocation10 + $0xa8] sm:$0xff]
        %v1746 = vld [vmem:[#allocation10 + $0xb0] sm:$0xff]
        %v1747 = vld [vmem:[#allocation10 + $0xb8] sm:$0xff]
        %v1748 = vld [vmem:[#allocation10 + $0xc0] sm:$0xff]
        %v1749 = vld [vmem:[#allocation10 + $0xc8] sm:$0xff]
        %v1750 = vld [vmem:[#allocation10 + $0xd0] sm:$0xff]
        %v1751 = vld [vmem:[#allocation10 + $0xd8] sm:$0xff]
        %v1752 = vld [vmem:[#allocation10 + $0xe0] sm:$0xff]
        %v1753 = vld [vmem:[#allocation10 + $0xe8] sm:$0xff]
        %v1754 = vld [vmem:[#allocation10 + $0xf0] sm:$0xff]
        %v1755 = vld [vmem:[#allocation10 + $0xf8] sm:$0xff]
        %v1756 = vld [vmem:[%s7] sm:$0x3]
        %v1758 = vperm.slane %v1756, 0
        %v1759 = vperm.slane %v1756, 1
        %v1794 = vunpack.c.l.b16 %v1724
        %v1795 = vunpack.c.h.b16 %v1724
        %v1796 = vunpack.c.l.b16 %v1725
        %v1797 = vunpack.c.h.b16 %v1725
        %v1798 = vunpack.c.l.b16 %v1726
        %v1799 = vunpack.c.h.b16 %v1726
        %v1800 = vunpack.c.l.b16 %v1727
        %v1801 = vunpack.c.h.b16 %v1727
        %v1802 = vunpack.c.l.b16 %v1728
        %v1803 = vunpack.c.h.b16 %v1728
        %v1804 = vunpack.c.l.b16 %v1729
        %v1805 = vunpack.c.h.b16 %v1729
        %v1806 = vunpack.c.l.b16 %v1730
        %v1807 = vunpack.c.h.b16 %v1730
        %v1808 = vunpack.c.l.b16 %v1731
        %v1809 = vunpack.c.h.b16 %v1731
        %v1810 = vunpack.c.l.b16 %v1732
        %v1811 = vunpack.c.h.b16 %v1732
        %v1812 = vunpack.c.l.b16 %v1733
        %v1813 = vunpack.c.h.b16 %v1733
        %v1814 = vunpack.c.l.b16 %v1734
        %v1815 = vunpack.c.h.b16 %v1734
        %v1816 = vunpack.c.l.b16 %v1735
        %v1817 = vunpack.c.h.b16 %v1735
        %v1818 = vunpack.c.l.b16 %v1736
        %v1819 = vunpack.c.h.b16 %v1736
        %v1820 = vunpack.c.l.b16 %v1737
        %v1821 = vunpack.c.h.b16 %v1737
        %v1822 = vunpack.c.l.b16 %v1738
        %v1823 = vunpack.c.h.b16 %v1738
        %v1824 = vunpack.c.l.b16 %v1739
        %v1825 = vunpack.c.h.b16 %v1739
        %v1826 = vunpack.c.l.b16 %v1740
        %v1827 = vunpack.c.h.b16 %v1740
        %v1828 = vunpack.c.l.b16 %v1741
        %v1829 = vunpack.c.h.b16 %v1741
        %v1830 = vunpack.c.l.b16 %v1742
        %v1831 = vunpack.c.h.b16 %v1742
        %v1832 = vunpack.c.l.b16 %v1743
        %v1833 = vunpack.c.h.b16 %v1743
        %v1834 = vunpack.c.l.b16 %v1744
        %v1835 = vunpack.c.h.b16 %v1744
        %v1836 = vunpack.c.l.b16 %v1745
        %v1837 = vunpack.c.h.b16 %v1745
        %v1838 = vunpack.c.l.b16 %v1746
        %v1839 = vunpack.c.h.b16 %v1746
        %v1840 = vunpack.c.l.b16 %v1747
        %v1841 = vunpack.c.h.b16 %v1747
        %v1842 = vunpack.c.l.b16 %v1748
        %v1843 = vunpack.c.h.b16 %v1748
        %v1844 = vunpack.c.l.b16 %v1749
        %v1845 = vunpack.c.h.b16 %v1749
        %v1846 = vunpack.c.l.b16 %v1750
        %v1847 = vunpack.c.h.b16 %v1750
        %v1848 = vunpack.c.l.b16 %v1751
        %v1849 = vunpack.c.h.b16 %v1751
        %v1850 = vunpack.c.l.b16 %v1752
        %v1851 = vunpack.c.h.b16 %v1752
        %v1852 = vunpack.c.l.b16 %v1753
        %v1853 = vunpack.c.h.b16 %v1753
        %v1854 = vunpack.c.l.b16 %v1754
        %v1855 = vunpack.c.h.b16 %v1754
        %v1856 = vunpack.c.l.b16 %v1755
        %v1857 = vunpack.c.h.b16 %v1755
        %v1858 = vpack.c.b16 %v1796, %v1794
        %v1859 = vpack.c.b16 %v1797, %v1795
        %v1860 = vpack.c.b16 %v1800, %v1798
        %v1861 = vpack.c.b16 %v1801, %v1799
        %v1862 = vpack.c.b16 %v1804, %v1802
        %v1863 = vpack.c.b16 %v1805, %v1803
        %v1864 = vpack.c.b16 %v1808, %v1806
        %v1865 = vpack.c.b16 %v1809, %v1807
        %v1866 = vpack.c.b16 %v1812, %v1810
        %v1867 = vpack.c.b16 %v1813, %v1811
        %v1868 = vpack.c.b16 %v1816, %v1814
        %v1869 = vpack.c.b16 %v1817, %v1815
        %v1870 = vpack.c.b16 %v1820, %v1818
        %v1871 = vpack.c.b16 %v1821, %v1819
        %v1872 = vpack.c.b16 %v1824, %v1822
        %v1873 = vpack.c.b16 %v1825, %v1823
        %v1874 = vpack.c.b16 %v1828, %v1826
        %v1875 = vpack.c.b16 %v1829, %v1827
        %v1876 = vpack.c.b16 %v1832, %v1830
        %v1877 = vpack.c.b16 %v1833, %v1831
        %v1878 = vpack.c.b16 %v1836, %v1834
        %v1879 = vpack.c.b16 %v1837, %v1835
        %v1880 = vpack.c.b16 %v1840, %v1838
        %v1881 = vpack.c.b16 %v1841, %v1839
        %v1882 = vpack.c.b16 %v1844, %v1842
        %v1883 = vpack.c.b16 %v1845, %v1843
        %v1884 = vpack.c.b16 %v1848, %v1846
        %v1885 = vpack.c.b16 %v1849, %v1847
        %v1886 = vpack.c.b16 %v1852, %v1850
        %v1887 = vpack.c.b16 %v1853, %v1851
        %v1888 = vpack.c.b16 %v1856, %v1854
        %v1889 = vpack.c.b16 %v1857, %v1855
        %1922 = vmatpush.bf16.msra.mxu0 %v1872
        %1923 = vmatpush.bf16.msra.mxu0 %v1870
        %1924 = vmatpush.bf16.msra.mxu0 %v1868
        %1925 = vmatpush.bf16.msra.mxu0 %v1866
        %1926 = vmatpush.bf16.msra.mxu0 %v1864
        %1927 = vmatpush.bf16.msra.mxu0 %v1862
        %1928 = vmatpush.bf16.msra.mxu0 %v1860
        %1929 = vmatpush.bf16.msra.mxu0 %v1858
        %1930 = vmatmul.bf16.gmra.mxu0 %v651
        %v1931 = vpop.f32.mrf.mxu0
        %v1932 = vadd.f32 %v1758, %v1931
        %v1933 = vpop.f32.mrf.mxu0
        %1934 = vdwg.mxu0
        %1935 = vmatpush.bf16.msra.mxu0 %v1888
        %1936 = vmatpush.bf16.msra.mxu0 %v1886
        %1937 = vmatpush.bf16.msra.mxu0 %v1884
        %1938 = vmatpush.bf16.msra.mxu0 %v1882
        %1939 = vmatpush.bf16.msra.mxu0 %v1880
        %1940 = vmatpush.bf16.msra.mxu0 %v1878
        %1941 = vmatpush.bf16.msra.mxu0 %v1876
        %1942 = vmatpush.bf16.msra.mxu0 %v1874
        %1943 = vmatmul.bf16.gmra.mxu0 %v652
        %v1944 = vpop.f32.mrf.mxu0
        %v1945 = vadd.f32 %v1932, %v1944
        %v1946 = vpop.f32.mrf.mxu0
        %1947 = vdwg.mxu0
        %1948 = vmatpush.bf16.msra.mxu0 %v1873
        %1949 = vmatpush.bf16.msra.mxu0 %v1871
        %1950 = vmatpush.bf16.msra.mxu0 %v1869
        %1951 = vmatpush.bf16.msra.mxu0 %v1867
        %1952 = vmatpush.bf16.msra.mxu0 %v1865
        %1953 = vmatpush.bf16.msra.mxu0 %v1863
        %1954 = vmatpush.bf16.msra.mxu0 %v1861
        %1955 = vmatpush.bf16.msra.mxu0 %v1859
        %1956 = vmatmul.bf16.gmra.mxu0 %v651
        %v1957 = vpop.f32.mrf.mxu0
        %v1958 = vadd.f32 %v1759, %v1957
        %v1959 = vpop.f32.mrf.mxu0
        %1960 = vdwg.mxu0
        %1961 = vmatpush.bf16.msra.mxu0 %v1889
        %1962 = vmatpush.bf16.msra.mxu0 %v1887
        %1963 = vmatpush.bf16.msra.mxu0 %v1885
        %1964 = vmatpush.bf16.msra.mxu0 %v1883
        %1965 = vmatpush.bf16.msra.mxu0 %v1881
        %1966 = vmatpush.bf16.msra.mxu0 %v1879
        %1967 = vmatpush.bf16.msra.mxu0 %v1877
        %1968 = vmatpush.bf16.msra.mxu0 %v1875
        %1969 = vmatmul.bf16.gmra.mxu0 %v652
        %v1970 = vpop.f32.mrf.mxu0
        %v1971 = vadd.f32 %v1958, %v1970
        %v1972 = vpop.f32.mrf.mxu0
        %1973 = vdwg.mxu0
        %v1974 = vld [vmem:[#allocation12] sm:$0xff]
        %v1975 = vld [vmem:[#allocation12 + $0x8] sm:$0xff]
        %v1976 = vld [vmem:[#allocation12 + $0x10] sm:$0xff]
        %v1977 = vld [vmem:[#allocation12 + $0x18] sm:$0xff]
        %v1978 = vld [vmem:[#allocation12 + $0x20] sm:$0xff]
        %v1979 = vld [vmem:[#allocation12 + $0x28] sm:$0xff]
        %v1980 = vld [vmem:[#allocation12 + $0x30] sm:$0xff]
        %v1981 = vld [vmem:[#allocation12 + $0x38] sm:$0xff]
        %v1982 = vld [vmem:[#allocation12 + $0x40] sm:$0xff]
        %v1983 = vld [vmem:[#allocation12 + $0x48] sm:$0xff]
        %v1984 = vld [vmem:[#allocation12 + $0x50] sm:$0xff]
        %v1985 = vld [vmem:[#allocation12 + $0x58] sm:$0xff]
        %v1986 = vld [vmem:[#allocation12 + $0x60] sm:$0xff]
        %v1987 = vld [vmem:[#allocation12 + $0x68] sm:$0xff]
        %v1988 = vld [vmem:[#allocation12 + $0x70] sm:$0xff]
        %v1989 = vld [vmem:[#allocation12 + $0x78] sm:$0xff]
        %v1990 = vld [vmem:[#allocation12 + $0x80] sm:$0xff]
        %v1991 = vld [vmem:[#allocation12 + $0x88] sm:$0xff]
        %v1992 = vld [vmem:[#allocation12 + $0x90] sm:$0xff]
        %v1993 = vld [vmem:[#allocation12 + $0x98] sm:$0xff]
        %v1994 = vld [vmem:[#allocation12 + $0xa0] sm:$0xff]
        %v1995 = vld [vmem:[#allocation12 + $0xa8] sm:$0xff]
        %v1996 = vld [vmem:[#allocation12 + $0xb0] sm:$0xff]
        %v1997 = vld [vmem:[#allocation12 + $0xb8] sm:$0xff]
        %v1998 = vld [vmem:[#allocation12 + $0xc0] sm:$0xff]
        %v1999 = vld [vmem:[#allocation12 + $0xc8] sm:$0xff]
        %v2000 = vld [vmem:[#allocation12 + $0xd0] sm:$0xff]
        %v2001 = vld [vmem:[#allocation12 + $0xd8] sm:$0xff]
        %v2002 = vld [vmem:[#allocation12 + $0xe0] sm:$0xff]
        %v2003 = vld [vmem:[#allocation12 + $0xe8] sm:$0xff]
        %v2004 = vld [vmem:[#allocation12 + $0xf0] sm:$0xff]
        %v2005 = vld [vmem:[#allocation12 + $0xf8] sm:$0xff]
        %v2006 = vld [vmem:[#allocation13] sm:$0x3]
        %v2008 = vperm.slane %v2006, 0
        %v2009 = vperm.slane %v2006, 1
        %v2044 = vunpack.c.l.b16 %v1974
        %v2045 = vunpack.c.h.b16 %v1974
        %v2046 = vunpack.c.l.b16 %v1975
        %v2047 = vunpack.c.h.b16 %v1975
        %v2048 = vunpack.c.l.b16 %v1976
        %v2049 = vunpack.c.h.b16 %v1976
        %v2050 = vunpack.c.l.b16 %v1977
        %v2051 = vunpack.c.h.b16 %v1977
        %v2052 = vunpack.c.l.b16 %v1978
        %v2053 = vunpack.c.h.b16 %v1978
        %v2054 = vunpack.c.l.b16 %v1979
        %v2055 = vunpack.c.h.b16 %v1979
        %v2056 = vunpack.c.l.b16 %v1980
        %v2057 = vunpack.c.h.b16 %v1980
        %v2058 = vunpack.c.l.b16 %v1981
        %v2059 = vunpack.c.h.b16 %v1981
        %v2060 = vunpack.c.l.b16 %v1982
        %v2061 = vunpack.c.h.b16 %v1982
        %v2062 = vunpack.c.l.b16 %v1983
        %v2063 = vunpack.c.h.b16 %v1983
        %v2064 = vunpack.c.l.b16 %v1984
        %v2065 = vunpack.c.h.b16 %v1984
        %v2066 = vunpack.c.l.b16 %v1985
        %v2067 = vunpack.c.h.b16 %v1985
        %v2068 = vunpack.c.l.b16 %v1986
        %v2069 = vunpack.c.h.b16 %v1986
        %v2070 = vunpack.c.l.b16 %v1987
        %v2071 = vunpack.c.h.b16 %v1987
        %v2072 = vunpack.c.l.b16 %v1988
        %v2073 = vunpack.c.h.b16 %v1988
        %v2074 = vunpack.c.l.b16 %v1989
        %v2075 = vunpack.c.h.b16 %v1989
        %v2076 = vunpack.c.l.b16 %v1990
        %v2077 = vunpack.c.h.b16 %v1990
        %v2078 = vunpack.c.l.b16 %v1991
        %v2079 = vunpack.c.h.b16 %v1991
        %v2080 = vunpack.c.l.b16 %v1992
        %v2081 = vunpack.c.h.b16 %v1992
        %v2082 = vunpack.c.l.b16 %v1993
        %v2083 = vunpack.c.h.b16 %v1993
        %v2084 = vunpack.c.l.b16 %v1994
        %v2085 = vunpack.c.h.b16 %v1994
        %v2086 = vunpack.c.l.b16 %v1995
        %v2087 = vunpack.c.h.b16 %v1995
        %v2088 = vunpack.c.l.b16 %v1996
        %v2089 = vunpack.c.h.b16 %v1996
        %v2090 = vunpack.c.l.b16 %v1997
        %v2091 = vunpack.c.h.b16 %v1997
        %v2092 = vunpack.c.l.b16 %v1998
        %v2093 = vunpack.c.h.b16 %v1998
        %v2094 = vunpack.c.l.b16 %v1999
        %v2095 = vunpack.c.h.b16 %v1999
        %v2096 = vunpack.c.l.b16 %v2000
        %v2097 = vunpack.c.h.b16 %v2000
        %v2098 = vunpack.c.l.b16 %v2001
        %v2099 = vunpack.c.h.b16 %v2001
        %v2100 = vunpack.c.l.b16 %v2002
        %v2101 = vunpack.c.h.b16 %v2002
        %v2102 = vunpack.c.l.b16 %v2003
        %v2103 = vunpack.c.h.b16 %v2003
        %v2104 = vunpack.c.l.b16 %v2004
        %v2105 = vunpack.c.h.b16 %v2004
        %v2106 = vunpack.c.l.b16 %v2005
        %v2107 = vunpack.c.h.b16 %v2005
        %v2108 = vpack.c.b16 %v2046, %v2044
        %v2109 = vpack.c.b16 %v2047, %v2045
        %v2110 = vpack.c.b16 %v2050, %v2048
        %v2111 = vpack.c.b16 %v2051, %v2049
        %v2112 = vpack.c.b16 %v2054, %v2052
        %v2113 = vpack.c.b16 %v2055, %v2053
        %v2114 = vpack.c.b16 %v2058, %v2056
        %v2115 = vpack.c.b16 %v2059, %v2057
        %v2116 = vpack.c.b16 %v2062, %v2060
        %v2117 = vpack.c.b16 %v2063, %v2061
        %v2118 = vpack.c.b16 %v2066, %v2064
        %v2119 = vpack.c.b16 %v2067, %v2065
        %v2120 = vpack.c.b16 %v2070, %v2068
        %v2121 = vpack.c.b16 %v2071, %v2069
        %v2122 = vpack.c.b16 %v2074, %v2072
        %v2123 = vpack.c.b16 %v2075, %v2073
        %v2124 = vpack.c.b16 %v2078, %v2076
        %v2125 = vpack.c.b16 %v2079, %v2077
        %v2126 = vpack.c.b16 %v2082, %v2080
        %v2127 = vpack.c.b16 %v2083, %v2081
        %v2128 = vpack.c.b16 %v2086, %v2084
        %v2129 = vpack.c.b16 %v2087, %v2085
        %v2130 = vpack.c.b16 %v2090, %v2088
        %v2131 = vpack.c.b16 %v2091, %v2089
        %v2132 = vpack.c.b16 %v2094, %v2092
        %v2133 = vpack.c.b16 %v2095, %v2093
        %v2134 = vpack.c.b16 %v2098, %v2096
        %v2135 = vpack.c.b16 %v2099, %v2097
        %v2136 = vpack.c.b16 %v2102, %v2100
        %v2137 = vpack.c.b16 %v2103, %v2101
        %v2138 = vpack.c.b16 %v2106, %v2104
        %v2139 = vpack.c.b16 %v2107, %v2105
        %2172 = vmatpush.bf16.msra.mxu0 %v2122
        %2173 = vmatpush.bf16.msra.mxu0 %v2120
        %2174 = vmatpush.bf16.msra.mxu0 %v2118
        %2175 = vmatpush.bf16.msra.mxu0 %v2116
        %2176 = vmatpush.bf16.msra.mxu0 %v2114
        %2177 = vmatpush.bf16.msra.mxu0 %v2112
        %2178 = vmatpush.bf16.msra.mxu0 %v2110
        %2179 = vmatpush.bf16.msra.mxu0 %v2108
        %2180 = vmatmul.bf16.gmra.mxu0 %v658
        %v2181 = vpop.f32.mrf.mxu0
        %v2182 = vadd.f32 %v2008, %v2181
        %v2183 = vpop.f32.mrf.mxu0
        %2184 = vdwg.mxu0
        %2185 = vmatpush.bf16.msra.mxu0 %v2138
        %2186 = vmatpush.bf16.msra.mxu0 %v2136
        %2187 = vmatpush.bf16.msra.mxu0 %v2134
        %2188 = vmatpush.bf16.msra.mxu0 %v2132
        %2189 = vmatpush.bf16.msra.mxu0 %v2130
        %2190 = vmatpush.bf16.msra.mxu0 %v2128
        %2191 = vmatpush.bf16.msra.mxu0 %v2126
        %2192 = vmatpush.bf16.msra.mxu0 %v2124
        %2193 = vmatmul.bf16.gmra.mxu0 %v659
        %v2194 = vpop.f32.mrf.mxu0
        %v2195 = vadd.f32 %v2182, %v2194
        %v2196 = vpop.f32.mrf.mxu0
        %2197 = vdwg.mxu0
        %2198 = vmatpush.bf16.msra.mxu0 %v2123
        %2199 = vmatpush.bf16.msra.mxu0 %v2121
        %2200 = vmatpush.bf16.msra.mxu0 %v2119
        %2201 = vmatpush.bf16.msra.mxu0 %v2117
        %2202 = vmatpush.bf16.msra.mxu0 %v2115
        %2203 = vmatpush.bf16.msra.mxu0 %v2113
        %2204 = vmatpush.bf16.msra.mxu0 %v2111
        %2205 = vmatpush.bf16.msra.mxu0 %v2109
        %2206 = vmatmul.bf16.gmra.mxu0 %v658
        %v2207 = vpop.f32.mrf.mxu0
        %v2208 = vadd.f32 %v2009, %v2207
        %v2209 = vpop.f32.mrf.mxu0
        %2210 = vdwg.mxu0
        %2211 = vmatpush.bf16.msra.mxu0 %v2139
        %2212 = vmatpush.bf16.msra.mxu0 %v2137
        %2213 = vmatpush.bf16.msra.mxu0 %v2135
        %2214 = vmatpush.bf16.msra.mxu0 %v2133
        %2215 = vmatpush.bf16.msra.mxu0 %v2131
        %2216 = vmatpush.bf16.msra.mxu0 %v2129
        %2217 = vmatpush.bf16.msra.mxu0 %v2127
        %2218 = vmatpush.bf16.msra.mxu0 %v2125
        %2219 = vmatmul.bf16.gmra.mxu0 %v659
        %v2220 = vpop.f32.mrf.mxu0
        %v2221 = vadd.f32 %v2208, %v2220
        %v2222 = vpop.f32.mrf.mxu0
        %2223 = vdwg.mxu0
        %v2224 = vmul.f32 %v1670, %v2195
        %v2225 = vmul.f32 %v1685, %v2221
        %v2226 = vadd.f32 %v1945, %v2224
        %v2227 = vadd.f32 %v1971, %v2225
        %v2228 = vtanh.pop %v2226
        %v2229 = vtanh.pop %v2227
        %v2230 = vsub.f32 1.0, %v1708
        %v2231 = vsub.f32 1.0, %v1723
        %v2232 = vmul.f32 %v2230, %v2228
        %v2233 = vmul.f32 %v2231, %v2229
        %v2234 = vmul.f32 %v1708, %v493
        %v2235 = vmul.f32 %v1723, %v494
        %v2236 = vadd.f32 %v2232, %v2234
        %v2237 = vadd.f32 %v2233, %v2235
        %v2238 = vpack.c.bf16 %v2236, %v2236
        %v2239 = vpack.c.bf16 %v2237, %v2237
        %v2240 = vld [vmem:[#allocation15] sm:$0xff]
        %v2241 = vld [vmem:[#allocation15 + $0x8] sm:$0xff]
        %v2242 = vld [vmem:[#allocation15 + $0x10] sm:$0xff]
        %v2243 = vld [vmem:[#allocation15 + $0x18] sm:$0xff]
        %v2244 = vld [vmem:[#allocation15 + $0x20] sm:$0xff]
        %v2245 = vld [vmem:[#allocation15 + $0x28] sm:$0xff]
        %v2246 = vld [vmem:[#allocation15 + $0x30] sm:$0xff]
        %v2247 = vld [vmem:[#allocation15 + $0x38] sm:$0xff]
        %v2248 = vld [vmem:[#allocation15 + $0x40] sm:$0xff]
        %v2249 = vld [vmem:[#allocation15 + $0x48] sm:$0xff]
        %v2250 = vld [vmem:[#allocation15 + $0x50] sm:$0xff]
        %v2251 = vld [vmem:[#allocation15 + $0x58] sm:$0xff]
        %v2252 = vld [vmem:[#allocation15 + $0x60] sm:$0xff]
        %v2253 = vld [vmem:[#allocation15 + $0x68] sm:$0xff]
        %v2254 = vld [vmem:[#allocation15 + $0x70] sm:$0xff]
        %v2255 = vld [vmem:[#allocation15 + $0x78] sm:$0xff]
        %v2256 = vld [vmem:[#allocation15 + $0x80] sm:$0xff]
        %v2257 = vld [vmem:[#allocation15 + $0x88] sm:$0xff]
        %v2258 = vld [vmem:[#allocation15 + $0x90] sm:$0xff]
        %v2259 = vld [vmem:[#allocation15 + $0x98] sm:$0xff]
        %v2260 = vld [vmem:[#allocation15 + $0xa0] sm:$0xff]
        %v2261 = vld [vmem:[#allocation15 + $0xa8] sm:$0xff]
        %v2262 = vld [vmem:[#allocation15 + $0xb0] sm:$0xff]
        %v2263 = vld [vmem:[#allocation15 + $0xb8] sm:$0xff]
        %v2264 = vld [vmem:[#allocation15 + $0xc0] sm:$0xff]
        %v2265 = vld [vmem:[#allocation15 + $0xc8] sm:$0xff]
        %v2266 = vld [vmem:[#allocation15 + $0xd0] sm:$0xff]
        %v2267 = vld [vmem:[#allocation15 + $0xd8] sm:$0xff]
        %v2268 = vld [vmem:[#allocation15 + $0xe0] sm:$0xff]
        %v2269 = vld [vmem:[#allocation15 + $0xe8] sm:$0xff]
        %v2270 = vld [vmem:[#allocation15 + $0xf0] sm:$0xff]
        %v2271 = vld [vmem:[#allocation15 + $0xf8] sm:$0xff]
        %v2272 = vld [vmem:[%s10] sm:$0x3]
        %v2274 = vperm.slane %v2272, 0
        %v2275 = vperm.slane %v2272, 1
        %v2310 = vunpack.c.l.b16 %v2240
        %v2311 = vunpack.c.h.b16 %v2240
        %v2312 = vunpack.c.l.b16 %v2241
        %v2313 = vunpack.c.h.b16 %v2241
        %v2314 = vunpack.c.l.b16 %v2242
        %v2315 = vunpack.c.h.b16 %v2242
        %v2316 = vunpack.c.l.b16 %v2243
        %v2317 = vunpack.c.h.b16 %v2243
        %v2318 = vunpack.c.l.b16 %v2244
        %v2319 = vunpack.c.h.b16 %v2244
        %v2320 = vunpack.c.l.b16 %v2245
        %v2321 = vunpack.c.h.b16 %v2245
        %v2322 = vunpack.c.l.b16 %v2246
        %v2323 = vunpack.c.h.b16 %v2246
        %v2324 = vunpack.c.l.b16 %v2247
        %v2325 = vunpack.c.h.b16 %v2247
        %v2326 = vunpack.c.l.b16 %v2248
        %v2327 = vunpack.c.h.b16 %v2248
        %v2328 = vunpack.c.l.b16 %v2249
        %v2329 = vunpack.c.h.b16 %v2249
        %v2330 = vunpack.c.l.b16 %v2250
        %v2331 = vunpack.c.h.b16 %v2250
        %v2332 = vunpack.c.l.b16 %v2251
        %v2333 = vunpack.c.h.b16 %v2251
        %v2334 = vunpack.c.l.b16 %v2252
        %v2335 = vunpack.c.h.b16 %v2252
        %v2336 = vunpack.c.l.b16 %v2253
        %v2337 = vunpack.c.h.b16 %v2253
        %v2338 = vunpack.c.l.b16 %v2254
        %v2339 = vunpack.c.h.b16 %v2254
        %v2340 = vunpack.c.l.b16 %v2255
        %v2341 = vunpack.c.h.b16 %v2255
        %v2342 = vunpack.c.l.b16 %v2256
        %v2343 = vunpack.c.h.b16 %v2256
        %v2344 = vunpack.c.l.b16 %v2257
        %v2345 = vunpack.c.h.b16 %v2257
        %v2346 = vunpack.c.l.b16 %v2258
        %v2347 = vunpack.c.h.b16 %v2258
        %v2348 = vunpack.c.l.b16 %v2259
        %v2349 = vunpack.c.h.b16 %v2259
        %v2350 = vunpack.c.l.b16 %v2260
        %v2351 = vunpack.c.h.b16 %v2260
        %v2352 = vunpack.c.l.b16 %v2261
        %v2353 = vunpack.c.h.b16 %v2261
        %v2354 = vunpack.c.l.b16 %v2262
        %v2355 = vunpack.c.h.b16 %v2262
        %v2356 = vunpack.c.l.b16 %v2263
        %v2357 = vunpack.c.h.b16 %v2263
        %v2358 = vunpack.c.l.b16 %v2264
        %v2359 = vunpack.c.h.b16 %v2264
        %v2360 = vunpack.c.l.b16 %v2265
        %v2361 = vunpack.c.h.b16 %v2265
        %v2362 = vunpack.c.l.b16 %v2266
        %v2363 = vunpack.c.h.b16 %v2266
        %v2364 = vunpack.c.l.b16 %v2267
        %v2365 = vunpack.c.h.b16 %v2267
        %v2366 = vunpack.c.l.b16 %v2268
        %v2367 = vunpack.c.h.b16 %v2268
        %v2368 = vunpack.c.l.b16 %v2269
        %v2369 = vunpack.c.h.b16 %v2269
        %v2370 = vunpack.c.l.b16 %v2270
        %v2371 = vunpack.c.h.b16 %v2270
        %v2372 = vunpack.c.l.b16 %v2271
        %v2373 = vunpack.c.h.b16 %v2271
        %v2374 = vpack.c.b16 %v2312, %v2310
        %v2375 = vpack.c.b16 %v2313, %v2311
        %v2376 = vpack.c.b16 %v2316, %v2314
        %v2377 = vpack.c.b16 %v2317, %v2315
        %v2378 = vpack.c.b16 %v2320, %v2318
        %v2379 = vpack.c.b16 %v2321, %v2319
        %v2380 = vpack.c.b16 %v2324, %v2322
        %v2381 = vpack.c.b16 %v2325, %v2323
        %v2382 = vpack.c.b16 %v2328, %v2326
        %v2383 = vpack.c.b16 %v2329, %v2327
        %v2384 = vpack.c.b16 %v2332, %v2330
        %v2385 = vpack.c.b16 %v2333, %v2331
        %v2386 = vpack.c.b16 %v2336, %v2334
        %v2387 = vpack.c.b16 %v2337, %v2335
        %v2388 = vpack.c.b16 %v2340, %v2338
        %v2389 = vpack.c.b16 %v2341, %v2339
        %v2390 = vpack.c.b16 %v2344, %v2342
        %v2391 = vpack.c.b16 %v2345, %v2343
        %v2392 = vpack.c.b16 %v2348, %v2346
        %v2393 = vpack.c.b16 %v2349, %v2347
        %v2394 = vpack.c.b16 %v2352, %v2350
        %v2395 = vpack.c.b16 %v2353, %v2351
        %v2396 = vpack.c.b16 %v2356, %v2354
        %v2397 = vpack.c.b16 %v2357, %v2355
        %v2398 = vpack.c.b16 %v2360, %v2358
        %v2399 = vpack.c.b16 %v2361, %v2359
        %v2400 = vpack.c.b16 %v2364, %v2362
        %v2401 = vpack.c.b16 %v2365, %v2363
        %v2402 = vpack.c.b16 %v2368, %v2366
        %v2403 = vpack.c.b16 %v2369, %v2367
        %v2404 = vpack.c.b16 %v2372, %v2370
        %v2405 = vpack.c.b16 %v2373, %v2371
        %2438 = vmatpush.bf16.msra.mxu0 %v2388
        %2439 = vmatpush.bf16.msra.mxu0 %v2386
        %2440 = vmatpush.bf16.msra.mxu0 %v2384
        %2441 = vmatpush.bf16.msra.mxu0 %v2382
        %2442 = vmatpush.bf16.msra.mxu0 %v2380
        %2443 = vmatpush.bf16.msra.mxu0 %v2378
        %2444 = vmatpush.bf16.msra.mxu0 %v2376
        %2445 = vmatpush.bf16.msra.mxu0 %v2374
        %2446 = vmatmul.bf16.gmra.mxu0 %v2238
        %v2447 = vpop.f32.mrf.mxu0
        %v2448 = vadd.f32 %v2274, %v2447
        %v2449 = vpop.f32.mrf.mxu0
        %2450 = vdwg.mxu0
        %2451 = vmatpush.bf16.msra.mxu0 %v2404
        %2452 = vmatpush.bf16.msra.mxu0 %v2402
        %2453 = vmatpush.bf16.msra.mxu0 %v2400
        %2454 = vmatpush.bf16.msra.mxu0 %v2398
        %2455 = vmatpush.bf16.msra.mxu0 %v2396
        %2456 = vmatpush.bf16.msra.mxu0 %v2394
        %2457 = vmatpush.bf16.msra.mxu0 %v2392
        %2458 = vmatpush.bf16.msra.mxu0 %v2390
        %2459 = vmatmul.bf16.gmra.mxu0 %v2239
        %v2460 = vpop.f32.mrf.mxu0
        %v2461 = vadd.f32 %v2448, %v2460
        %v2462 = vpop.f32.mrf.mxu0
        %2463 = vdwg.mxu0
        %2464 = vmatpush.bf16.msra.mxu0 %v2389
        %2465 = vmatpush.bf16.msra.mxu0 %v2387
        %2466 = vmatpush.bf16.msra.mxu0 %v2385
        %2467 = vmatpush.bf16.msra.mxu0 %v2383
        %2468 = vmatpush.bf16.msra.mxu0 %v2381
        %2469 = vmatpush.bf16.msra.mxu0 %v2379
        %2470 = vmatpush.bf16.msra.mxu0 %v2377
        %2471 = vmatpush.bf16.msra.mxu0 %v2375
        %2472 = vmatmul.bf16.gmra.mxu0 %v2238
        %v2473 = vpop.f32.mrf.mxu0
        %v2474 = vadd.f32 %v2275, %v2473
        %v2475 = vpop.f32.mrf.mxu0
        %2476 = vdwg.mxu0
        %2477 = vmatpush.bf16.msra.mxu0 %v2405
        %2478 = vmatpush.bf16.msra.mxu0 %v2403
        %2479 = vmatpush.bf16.msra.mxu0 %v2401
        %2480 = vmatpush.bf16.msra.mxu0 %v2399
        %2481 = vmatpush.bf16.msra.mxu0 %v2397
        %2482 = vmatpush.bf16.msra.mxu0 %v2395
        %2483 = vmatpush.bf16.msra.mxu0 %v2393
        %2484 = vmatpush.bf16.msra.mxu0 %v2391
        %2485 = vmatmul.bf16.gmra.mxu0 %v2239
        %v2486 = vpop.f32.mrf.mxu0
        %v2487 = vadd.f32 %v2474, %v2486
        %v2488 = vpop.f32.mrf.mxu0
        %2489 = vdwg.mxu0
        %v2490 = vmax.f32 %v2461, %v2487
        %2491 = vmax.xlane.f32.xlu0 %v2490
        %v2492 = vpop.xlane.xlu0 %2491
        %v2493 = vsub.f32 %v2461, %v2492
        %v2494 = vsub.f32 %v2487, %v2492
        %v2495 = vmul.f32 %v2493, 1.442695
        %v2496 = vpow.pop %v2495
        %v2497 = vmul.f32 %v2494, 1.442695
        %v2498 = vpow.pop %v2497
        %v2499 = vadd.f32 %v2496, %v2498
        %2500 = vadd.xlane.f32.xlu0 %v2499
        %v2501 = vpop.xlane.xlu0 %2500
        %v2502 = vlog2.pop %v2501
        %v2503 = vmul.f32 %v2502, 0.6931472
        %v2504 = vsub.f32 %v2493, %v2503
        %v2505 = vsub.f32 %v2494, %v2503
        %2506 = vst [vmem:[%s482] sm:$0xff] %v2504
        %2507 = vst [vmem:[%s482 + $0x8] sm:$0xff] %v2505
        %2508 = vst [vmem:[#allocation17] sm:$0xff] %v2236
        %2509 = vst [vmem:[#allocation17 + $0x8] sm:$0xff] %v2237
        %s2510 = sand.u32 %s258, 1
        %s2511 = scalar_lea.sflag [#allocation6], %s2510
        %s2512 = sand.u32 %s258, 1
        %s2513 = smul.addr %s2512, 16
        %s2514 = scalar_lea.vmem [#allocation16], %s2513
        // Predicated region
        $region93: #{tpu_custom_call.1} parent=59 // pred_check
          %p2515 = pneg %p268
        $region94: #{tpu_custom_call.1} parent=59 // pred_check_branch
          %2517 = sbr.rel (%p2515) target = $region96
        $region95: #{tpu_custom_call.1} parent=59 // pred_region
          %2519 = vsyncadd %s2511, 0
          %s2520 = smul.addr %s40, 2
          %s2521 = smul.addr %s2520, 8
          %s2522 = scalar_lea.hbm %s11, %s2521
          %s2524 = sshll.u32 %s2514, 4
          %s2525 = int_to_ptr.vmem [resolvable:$true] %s2524
          %s2526 = sshll.u32 %s2522, 4
          %s2527 = int_to_ptr.hbm [resolvable:$true] %s2526
          %2529 = dma.vmem_to_hbm [thread:$0]  %s2525, 256, %s2527, %s2511
        $region96: #{tpu_custom_call.1} parent=59 // pred_fallthru
          _
        // Predicated region
        $region97: #{tpu_custom_call.1} parent=59 // pred_check
          %p2530 = pneg %p289
        $region98: #{tpu_custom_call.1} parent=59 // pred_check_branch
          %2532 = sbr.rel (%p2530) target = $region100
        $region99: #{tpu_custom_call.1} parent=59 // pred_region
          %2534 = vsyncadd [#allocation18], 0
          %s2536 = sshll.u32 [#allocation17], 4
          %s2537 = int_to_ptr.vmem [resolvable:$true] %s2536
          %s2538 = sshll.u32 %s12, 4
          %s2539 = int_to_ptr.hbm [resolvable:$true] %s2538
          %2541 = dma.vmem_to_hbm [thread:$0]  %s2537, 256, %s2539, [#allocation18]
        $region100: #{tpu_custom_call.1} parent=59 // pred_fallthru
          _
        // Predicated region
        $region101: #{tpu_custom_call.1} parent=59 // pred_check
          %p2542 = pneg %p289
        $region102: #{tpu_custom_call.1} parent=59 // pred_check_branch
          %2544 = sbr.rel (%p2542) target = $region104
        $region103: #{tpu_custom_call.1} parent=59 // pred_region
          %2546 = dma.done [#allocation18], 256
        $region104: #{tpu_custom_call.1} parent=59 // pred_fallthru
          _
      $region60: #{tpu_custom_call.1} parent=5 // pred_fallthru
        _
      %p2547 = scmp.le.s32.totalorder 2, %s35
      // Predicated region
      $region105: #{tpu_custom_call.1} parent=5 // pred_check
        %p2548 = pneg %p2547
      $region106: #{tpu_custom_call.1} parent=5 // pred_check_branch
        %2550 = sbr.rel (%p2548) target = $region108
      $region107: #{tpu_custom_call.1} parent=5 // pred_region
        %s2551 = ssub.s32 %s35, 2
        // Predicated region
        $region109: #{tpu_custom_call.1} parent=107 // pred_check
          %p2552 = pneg %p274
        $region110: #{tpu_custom_call.1} parent=107 // pred_check_branch
          %2554 = sbr.rel (%p2552) target = $region112
        $region111: #{tpu_custom_call.1} parent=107 // pred_region
          %s2555 = sand.u32 %s259, 1
          %s2556 = scalar_lea.sflag [#allocation6], %s2555
          %s2557 = sand.u32 %s259, 1
          %s2558 = smul.addr %s2557, 16
          %s2559 = scalar_lea.vmem [#allocation16], %s2558
          %2561 = dma.done %s2556, 256
        $region112: #{tpu_custom_call.1} parent=107 // pred_fallthru
          _
      $region108: #{tpu_custom_call.1} parent=5 // pred_fallthru
        _
    $region6: #{tpu_custom_call.1} parent=1 // loop_footer
      %s39 = sadd.s32 1, %s35
    $region7: #{tpu_custom_call.1} parent=1 // loop_footer_branch
      %34 = sbr.rel target = $region3
    $region8: #{tpu_custom_call.1} parent=1 // loop_exit
      _
    %2562 = vsyncpa [#allocation5], 1
    %s2563 = scalar_lea.sflag [#allocation5], 1
    %2564 = vsyncpa %s2563, 1
    %2565 = vsyncpa [#allocation8], 1
    %2566 = vsyncpa [#allocation11], 1
    %2567 = vsyncpa [#allocation14], 1
    %2568 = vsyncpa [#allocation6], 1
    %s2569 = scalar_lea.sflag [#allocation6], 1
    %2570 = vsyncpa %s2569, 1
    %2571 = vsyncpa [#allocation18], 1

</llo_original>
